<compile_context>
chip_gen: v7x
topology: tpu7x:2x2x1
jax: 0.10.0
libtpu: 0.0.40
codegen_flags: <defaults>
</compile_context>

<pallas_src>
import jax
import jax.numpy as jnp
from jax.experimental import pallas as pl
from jax.experimental.pallas import tpu as pltpu

INPUT_SIZE = 784
HIDDEN_SIZE = 256
NUM_LAYERS = 10            # hidden Linear+ReLU layers (first 784->256, rest 256->256)
OUT_SIZE = 10
NUM_HIDDEN = NUM_LAYERS - 1    # nine uniform (256,256) hidden layers
N_PAD = 128                    # 10 -> 128 (lane-dense output slab)


# ---------------------------------------------------------------------------
# Fused kernel: the WHOLE network runs in one grid step per batch tile.
# ---------------------------------------------------------------------------
def _mlp_kernel(x_ref, w0_ref, b0_ref, wh_ref, bh_ref, wo_ref, bo_ref, o_ref):
    # x_ref : (TB, 784)        f32  (batch tile, streamed per grid step)
    # w0_ref: (784, 256)       bf16 resident
    # b0_ref: (1, 256)         f32  resident
    # wh_ref: (9, 256, 256)    bf16 resident (all hidden weights)
    # bh_ref: (9, 1, 256)      f32  resident (all hidden biases)
    # wo_ref: (256, 128)       bf16 resident (output weight, N padded to 128)
    # bo_ref: (1, 128)         f32  resident
    # o_ref : (TB, 128)        f32  (lane-dense output tile)
    h = jnp.dot(x_ref[...].astype(jnp.bfloat16), w0_ref[...],
                preferred_element_type=jnp.float32)
    h = jnp.maximum(h + b0_ref[...], 0.0).astype(jnp.bfloat16)

    # Statically unrolled layer loop: 9 iterations, static indices into the
    # resident weight stack -> one basic block, zero per-layer DMA / step overhead.
    for i in range(NUM_HIDDEN):
        y = jnp.dot(h, wh_ref[i], preferred_element_type=jnp.float32)
        h = jnp.maximum(y + bh_ref[i], 0.0).astype(jnp.bfloat16)

    y = jnp.dot(h, wo_ref[...], preferred_element_type=jnp.float32)
    o_ref[...] = (y + bo_ref[...]).astype(o_ref.dtype)


def _round_up(n, m):
    return ((n + m - 1) // m) * m


def relu_solution_pallas(x, prepared, *, max_batch_tile=256):
    w0, b0, wh, bh, wo, bo = prepared
    B = x.shape[0]
    TB = min(max_batch_tile, _round_up(B, 8))      # batch tile (multiple of 8)
    Bp = _round_up(B, TB)
    if Bp != B:
        x = jnp.pad(x, ((0, Bp - B), (0, 0)))

    out = pl.pallas_call(
        _mlp_kernel,
        out_shape=jax.ShapeDtypeStruct((Bp, N_PAD), jnp.float32),
        grid=(Bp // TB,),
        in_specs=[
            pl.BlockSpec((TB, INPUT_SIZE), lambda b: (b, 0)),              # x tile
            pl.BlockSpec((INPUT_SIZE, HIDDEN_SIZE), lambda b: (0, 0)),     # w0 (resident)
            pl.BlockSpec((1, HIDDEN_SIZE), lambda b: (0, 0)),              # b0 (resident)
            pl.BlockSpec((NUM_HIDDEN, HIDDEN_SIZE, HIDDEN_SIZE),
                         lambda b: (0, 0, 0)),                             # wh (resident)
            pl.BlockSpec((NUM_HIDDEN, 1, HIDDEN_SIZE),
                         lambda b: (0, 0, 0)),                             # bh (resident)
            pl.BlockSpec((HIDDEN_SIZE, N_PAD), lambda b: (0, 0)),          # wo (resident)
            pl.BlockSpec((1, N_PAD), lambda b: (0, 0)),                    # bo (resident)
        ],
        out_specs=pl.BlockSpec((TB, N_PAD), lambda b: (b, 0)),
        compiler_params=pltpu.CompilerParams(
            dimension_semantics=("parallel",)),     # batch tiles are independent (v7x: 2 TCs)
    )(x, w0, b0, wh, bh, wo, bo)
    return out[:B, :OUT_SIZE]


# ---------------------------------------------------------------------------
# Parameter init (PyTorch-style U(-1/sqrt(fan_in), +)) and packing for the kernel
# ---------------------------------------------------------------------------
def init_params(key, input_size=INPUT_SIZE, hidden_size=HIDDEN_SIZE,
                num_layers=NUM_LAYERS, out_size=OUT_SIZE):
    params = []
    dims = [(input_size if i == 0 else hidden_size, hidden_size)
            for i in range(num_layers)]
    dims.append((hidden_size, out_size))
    for fan_in, fan_out in dims:
        key, kw, kb = jax.random.split(key, 3)
        bound = 1.0 / jnp.sqrt(float(fan_in))
        w = jax.random.uniform(kw, (fan_in, fan_out), jnp.float32, -bound, bound)
        b = jax.random.uniform(kb, (fan_out,), jnp.float32, -bound, bound)
        params.append((w, b))
    return params


def prepare_params(params):
    """Stack / pad / cast per-layer params into the fused-kernel layout."""
    w0, b0 = params[0]
    hidden = params[1:NUM_LAYERS]
    wo, bo = params[NUM_LAYERS]

    w0p = w0.astype(jnp.bfloat16)                                           # (784, 256)
    b0p = b0.reshape(1, HIDDEN_SIZE).astype(jnp.float32)                    # (1, 256)

    wh = jnp.stack([w for (w, _) in hidden]).astype(jnp.bfloat16)           # (9, 256, 256)
    bh = jnp.stack([b for (_, b) in hidden]).reshape(
        NUM_HIDDEN, 1, HIDDEN_SIZE).astype(jnp.float32)                     # (9, 1, 256)

    wop = jnp.pad(wo, ((0, 0), (0, N_PAD - wo.shape[1]))).astype(jnp.bfloat16)   # (256, 128)
    bop = jnp.pad(bo, (0, N_PAD - bo.shape[0])).reshape(1, N_PAD).astype(jnp.float32)
    return (w0p, b0p, wh, bh, wop, bop)


@jax.jit
def relu_solution_forward(prepared, x):
    return relu_solution_pallas(x, prepared)


# Plain-JAX reference mirroring the kernel's bf16-weight / bf16-activation matmuls
# with f32 accumulation and f32 bias + ReLU epilogue.
def reference_forward(params, x):
    h = x
    for w, b in params[:-1]:
        w16 = w.astype(jnp.bfloat16).astype(jnp.float32)
        h16 = h.astype(jnp.bfloat16).astype(jnp.float32)
        h = jnp.maximum(h16 @ w16 + b, 0.0)
    w, b = params[-1]
    w16 = w.astype(jnp.bfloat16).astype(jnp.float32)
    h16 = h.astype(jnp.bfloat16).astype(jnp.float32)
    return h16 @ w16 + b


if __name__ == "__main__":
    key = jax.random.PRNGKey(0)
    key, pkey, xkey = jax.random.split(key, 3)

    batch = 8
    params = init_params(pkey)
    prepared = prepare_params(params)
    x = jax.random.normal(xkey, (batch, INPUT_SIZE), dtype=jnp.float32)

    out = relu_solution_forward(prepared, x)
    jax.block_until_ready(out)
    assert out.shape == (batch, OUT_SIZE), out.shape

    ref = reference_forward(params, x)
    assert jnp.allclose(out, ref, atol=2e-3, rtol=2e-3), \
        float(jnp.max(jnp.abs(out - ref)))

    print("KERNEL_OK")
</pallas_src>

<mosaic_0001>
module attributes {stable_mosaic.version = 11 : i64} {
  func.func @_mlp_kernel(%arg0: i32, %arg1: memref<8x784xf32, #tpu.memory_space<vmem>>, %arg2: memref<784x256xbf16, #tpu.memory_space<vmem>>, %arg3: memref<1x256xf32, #tpu.memory_space<vmem>>, %arg4: memref<9x256x256xbf16, #tpu.memory_space<vmem>>, %arg5: memref<9x1x256xf32, #tpu.memory_space<vmem>>, %arg6: memref<256x128xbf16, #tpu.memory_space<vmem>>, %arg7: memref<1x128xf32, #tpu.memory_space<vmem>>, %arg8: memref<8x128xf32, #tpu.memory_space<vmem>>) attributes {dimension_semantics = [#tpu.dimension_semantics<parallel>], iteration_bounds = array<i64: 1>, scalar_prefetch = 0 : i64, scratch_operands = 0 : i64, tpu.core_type = #tpu.core_type<tc>, window_params = [{transform_indices = @transform_0, window_bounds = array<i64: 8, 784>}, {pipeline_mode = #tpu.pipeline_mode<synchronous>, transform_indices = @transform_1, window_bounds = array<i64: 784, 256>}, {pipeline_mode = #tpu.pipeline_mode<synchronous>, transform_indices = @transform_2, window_bounds = array<i64: 1, 256>}, {pipeline_mode = #tpu.pipeline_mode<synchronous>, transform_indices = @transform_3, window_bounds = array<i64: 9, 256, 256>}, {pipeline_mode = #tpu.pipeline_mode<synchronous>, transform_indices = @transform_4, window_bounds = array<i64: 9, 1, 256>}, {pipeline_mode = #tpu.pipeline_mode<synchronous>, transform_indices = @transform_5, window_bounds = array<i64: 256, 128>}, {pipeline_mode = #tpu.pipeline_mode<synchronous>, transform_indices = @transform_6, window_bounds = array<i64: 1, 128>}, {transform_indices = @transform_7, window_bounds = array<i64: 8, 128>}]} {
    %c0 = arith.constant 0 : index
    %c0_0 = arith.constant 0 : index
    %0 = vector.load %arg1[%c0, %c0_0] : memref<8x784xf32, #tpu.memory_space<vmem>>, vector<8x784xf32>
    %1 = arith.truncf %0 : vector<8x784xf32> to vector<8x784xbf16>
    %c0_1 = arith.constant 0 : index
    %c0_2 = arith.constant 0 : index
    %2 = vector.load %arg2[%c0_1, %c0_2] : memref<784x256xbf16, #tpu.memory_space<vmem>>, vector<784x256xbf16>
    %cst = arith.constant dense<0.000000e+00> : vector<8x256xf32>
    %3 = tpu.matmul %1, %2, %cst {dimension_numbers = #tpu.dot_dimension_numbers<[1], [0], [0], [1], [0, 0, 1, 1], [], []>} : vector<8x784xbf16>, vector<784x256xbf16>, vector<8x256xf32> -> vector<8x256xf32>
    %c0_3 = arith.constant 0 : index
    %c0_4 = arith.constant 0 : index
    %4 = vector.load %arg3[%c0_3, %c0_4] : memref<1x256xf32, #tpu.memory_space<vmem>>, vector<1x256xf32>
    %5 = vector.broadcast %4 : vector<1x256xf32> to vector<8x256xf32>
    %6 = arith.addf %3, %5 : vector<8x256xf32>
    %cst_5 = arith.constant 0.000000e+00 : f32
    %7 = vector.broadcast %cst_5 : f32 to vector<8x256xf32>
    %8 = arith.maximumf %6, %7 : vector<8x256xf32>
    %9 = arith.truncf %8 : vector<8x256xf32> to vector<8x256xbf16>
    %c0_6 = arith.constant 0 : index
    %c0_7 = arith.constant 0 : index
    %c0_8 = arith.constant 0 : index
    %10 = vector.load %arg4[%c0_6, %c0_7, %c0_8] : memref<9x256x256xbf16, #tpu.memory_space<vmem>>, vector<1x256x256xbf16>
    %11 = vector.shape_cast %10 : vector<1x256x256xbf16> to vector<256x256xbf16>
    %cst_9 = arith.constant dense<0.000000e+00> : vector<8x256xf32>
    %12 = tpu.matmul %9, %11, %cst_9 {dimension_numbers = #tpu.dot_dimension_numbers<[1], [0], [0], [1], [0, 0, 1, 1], [], []>} : vector<8x256xbf16>, vector<256x256xbf16>, vector<8x256xf32> -> vector<8x256xf32>
    %c0_10 = arith.constant 0 : index
    %c0_11 = arith.constant 0 : index
    %c0_12 = arith.constant 0 : index
    %13 = vector.load %arg5[%c0_10, %c0_11, %c0_12] : memref<9x1x256xf32, #tpu.memory_space<vmem>>, vector<1x1x256xf32>
    %14 = vector.shape_cast %13 : vector<1x1x256xf32> to vector<1x256xf32>
    %15 = vector.broadcast %14 : vector<1x256xf32> to vector<8x256xf32>
    %16 = arith.addf %12, %15 : vector<8x256xf32>
    %cst_13 = arith.constant 0.000000e+00 : f32
    %17 = vector.broadcast %cst_13 : f32 to vector<8x256xf32>
    %18 = arith.maximumf %16, %17 : vector<8x256xf32>
    %19 = arith.truncf %18 : vector<8x256xf32> to vector<8x256xbf16>
    %c1 = arith.constant 1 : index
    %c0_14 = arith.constant 0 : index
    %c0_15 = arith.constant 0 : index
    %20 = vector.load %arg4[%c1, %c0_14, %c0_15] : memref<9x256x256xbf16, #tpu.memory_space<vmem>>, vector<1x256x256xbf16>
    %21 = vector.shape_cast %20 : vector<1x256x256xbf16> to vector<256x256xbf16>
    %cst_16 = arith.constant dense<0.000000e+00> : vector<8x256xf32>
    %22 = tpu.matmul %19, %21, %cst_16 {dimension_numbers = #tpu.dot_dimension_numbers<[1], [0], [0], [1], [0, 0, 1, 1], [], []>} : vector<8x256xbf16>, vector<256x256xbf16>, vector<8x256xf32> -> vector<8x256xf32>
    %c1_17 = arith.constant 1 : index
    %c0_18 = arith.constant 0 : index
    %c0_19 = arith.constant 0 : index
    %23 = vector.load %arg5[%c1_17, %c0_18, %c0_19] : memref<9x1x256xf32, #tpu.memory_space<vmem>>, vector<1x1x256xf32>
    %24 = vector.shape_cast %23 : vector<1x1x256xf32> to vector<1x256xf32>
    %25 = vector.broadcast %24 : vector<1x256xf32> to vector<8x256xf32>
    %26 = arith.addf %22, %25 : vector<8x256xf32>
    %cst_20 = arith.constant 0.000000e+00 : f32
    %27 = vector.broadcast %cst_20 : f32 to vector<8x256xf32>
    %28 = arith.maximumf %26, %27 : vector<8x256xf32>
    %29 = arith.truncf %28 : vector<8x256xf32> to vector<8x256xbf16>
    %c2 = arith.constant 2 : index
    %c0_21 = arith.constant 0 : index
    %c0_22 = arith.constant 0 : index
    %30 = vector.load %arg4[%c2, %c0_21, %c0_22] : memref<9x256x256xbf16, #tpu.memory_space<vmem>>, vector<1x256x256xbf16>
    %31 = vector.shape_cast %30 : vector<1x256x256xbf16> to vector<256x256xbf16>
    %cst_23 = arith.constant dense<0.000000e+00> : vector<8x256xf32>
    %32 = tpu.matmul %29, %31, %cst_23 {dimension_numbers = #tpu.dot_dimension_numbers<[1], [0], [0], [1], [0, 0, 1, 1], [], []>} : vector<8x256xbf16>, vector<256x256xbf16>, vector<8x256xf32> -> vector<8x256xf32>
    %c2_24 = arith.constant 2 : index
    %c0_25 = arith.constant 0 : index
    %c0_26 = arith.constant 0 : index
    %33 = vector.load %arg5[%c2_24, %c0_25, %c0_26] : memref<9x1x256xf32, #tpu.memory_space<vmem>>, vector<1x1x256xf32>
    %34 = vector.shape_cast %33 : vector<1x1x256xf32> to vector<1x256xf32>
    %35 = vector.broadcast %34 : vector<1x256xf32> to vector<8x256xf32>
    %36 = arith.addf %32, %35 : vector<8x256xf32>
    %cst_27 = arith.constant 0.000000e+00 : f32
    %37 = vector.broadcast %cst_27 : f32 to vector<8x256xf32>
    %38 = arith.maximumf %36, %37 : vector<8x256xf32>
    %39 = arith.truncf %38 : vector<8x256xf32> to vector<8x256xbf16>
    %c3 = arith.constant 3 : index
    %c0_28 = arith.constant 0 : index
    %c0_29 = arith.constant 0 : index
    %40 = vector.load %arg4[%c3, %c0_28, %c0_29] : memref<9x256x256xbf16, #tpu.memory_space<vmem>>, vector<1x256x256xbf16>
    %41 = vector.shape_cast %40 : vector<1x256x256xbf16> to vector<256x256xbf16>
    %cst_30 = arith.constant dense<0.000000e+00> : vector<8x256xf32>
    %42 = tpu.matmul %39, %41, %cst_30 {dimension_numbers = #tpu.dot_dimension_numbers<[1], [0], [0], [1], [0, 0, 1, 1], [], []>} : vector<8x256xbf16>, vector<256x256xbf16>, vector<8x256xf32> -> vector<8x256xf32>
    %c3_31 = arith.constant 3 : index
    %c0_32 = arith.constant 0 : index
    %c0_33 = arith.constant 0 : index
    %43 = vector.load %arg5[%c3_31, %c0_32, %c0_33] : memref<9x1x256xf32, #tpu.memory_space<vmem>>, vector<1x1x256xf32>
    %44 = vector.shape_cast %43 : vector<1x1x256xf32> to vector<1x256xf32>
    %45 = vector.broadcast %44 : vector<1x256xf32> to vector<8x256xf32>
    %46 = arith.addf %42, %45 : vector<8x256xf32>
    %cst_34 = arith.constant 0.000000e+00 : f32
    %47 = vector.broadcast %cst_34 : f32 to vector<8x256xf32>
    %48 = arith.maximumf %46, %47 : vector<8x256xf32>
    %49 = arith.truncf %48 : vector<8x256xf32> to vector<8x256xbf16>
    %c4 = arith.constant 4 : index
    %c0_35 = arith.constant 0 : index
    %c0_36 = arith.constant 0 : index
    %50 = vector.load %arg4[%c4, %c0_35, %c0_36] : memref<9x256x256xbf16, #tpu.memory_space<vmem>>, vector<1x256x256xbf16>
    %51 = vector.shape_cast %50 : vector<1x256x256xbf16> to vector<256x256xbf16>
    %cst_37 = arith.constant dense<0.000000e+00> : vector<8x256xf32>
    %52 = tpu.matmul %49, %51, %cst_37 {dimension_numbers = #tpu.dot_dimension_numbers<[1], [0], [0], [1], [0, 0, 1, 1], [], []>} : vector<8x256xbf16>, vector<256x256xbf16>, vector<8x256xf32> -> vector<8x256xf32>
    %c4_38 = arith.constant 4 : index
    %c0_39 = arith.constant 0 : index
    %c0_40 = arith.constant 0 : index
    %53 = vector.load %arg5[%c4_38, %c0_39, %c0_40] : memref<9x1x256xf32, #tpu.memory_space<vmem>>, vector<1x1x256xf32>
    %54 = vector.shape_cast %53 : vector<1x1x256xf32> to vector<1x256xf32>
    %55 = vector.broadcast %54 : vector<1x256xf32> to vector<8x256xf32>
    %56 = arith.addf %52, %55 : vector<8x256xf32>
    %cst_41 = arith.constant 0.000000e+00 : f32
    %57 = vector.broadcast %cst_41 : f32 to vector<8x256xf32>
    %58 = arith.maximumf %56, %57 : vector<8x256xf32>
    %59 = arith.truncf %58 : vector<8x256xf32> to vector<8x256xbf16>
    %c5 = arith.constant 5 : index
    %c0_42 = arith.constant 0 : index
    %c0_43 = arith.constant 0 : index
    %60 = vector.load %arg4[%c5, %c0_42, %c0_43] : memref<9x256x256xbf16, #tpu.memory_space<vmem>>, vector<1x256x256xbf16>
    %61 = vector.shape_cast %60 : vector<1x256x256xbf16> to vector<256x256xbf16>
    %cst_44 = arith.constant dense<0.000000e+00> : vector<8x256xf32>
    %62 = tpu.matmul %59, %61, %cst_44 {dimension_numbers = #tpu.dot_dimension_numbers<[1], [0], [0], [1], [0, 0, 1, 1], [], []>} : vector<8x256xbf16>, vector<256x256xbf16>, vector<8x256xf32> -> vector<8x256xf32>
    %c5_45 = arith.constant 5 : index
    %c0_46 = arith.constant 0 : index
    %c0_47 = arith.constant 0 : index
    %63 = vector.load %arg5[%c5_45, %c0_46, %c0_47] : memref<9x1x256xf32, #tpu.memory_space<vmem>>, vector<1x1x256xf32>
    %64 = vector.shape_cast %63 : vector<1x1x256xf32> to vector<1x256xf32>
    %65 = vector.broadcast %64 : vector<1x256xf32> to vector<8x256xf32>
    %66 = arith.addf %62, %65 : vector<8x256xf32>
    %cst_48 = arith.constant 0.000000e+00 : f32
    %67 = vector.broadcast %cst_48 : f32 to vector<8x256xf32>
    %68 = arith.maximumf %66, %67 : vector<8x256xf32>
    %69 = arith.truncf %68 : vector<8x256xf32> to vector<8x256xbf16>
    %c6 = arith.constant 6 : index
    %c0_49 = arith.constant 0 : index
    %c0_50 = arith.constant 0 : index
    %70 = vector.load %arg4[%c6, %c0_49, %c0_50] : memref<9x256x256xbf16, #tpu.memory_space<vmem>>, vector<1x256x256xbf16>
    %71 = vector.shape_cast %70 : vector<1x256x256xbf16> to vector<256x256xbf16>
    %cst_51 = arith.constant dense<0.000000e+00> : vector<8x256xf32>
    %72 = tpu.matmul %69, %71, %cst_51 {dimension_numbers = #tpu.dot_dimension_numbers<[1], [0], [0], [1], [0, 0, 1, 1], [], []>} : vector<8x256xbf16>, vector<256x256xbf16>, vector<8x256xf32> -> vector<8x256xf32>
    %c6_52 = arith.constant 6 : index
    %c0_53 = arith.constant 0 : index
    %c0_54 = arith.constant 0 : index
    %73 = vector.load %arg5[%c6_52, %c0_53, %c0_54] : memref<9x1x256xf32, #tpu.memory_space<vmem>>, vector<1x1x256xf32>
    %74 = vector.shape_cast %73 : vector<1x1x256xf32> to vector<1x256xf32>
    %75 = vector.broadcast %74 : vector<1x256xf32> to vector<8x256xf32>
    %76 = arith.addf %72, %75 : vector<8x256xf32>
    %cst_55 = arith.constant 0.000000e+00 : f32
    %77 = vector.broadcast %cst_55 : f32 to vector<8x256xf32>
    %78 = arith.maximumf %76, %77 : vector<8x256xf32>
    %79 = arith.truncf %78 : vector<8x256xf32> to vector<8x256xbf16>
    %c7 = arith.constant 7 : index
    %c0_56 = arith.constant 0 : index
    %c0_57 = arith.constant 0 : index
    %80 = vector.load %arg4[%c7, %c0_56, %c0_57] : memref<9x256x256xbf16, #tpu.memory_space<vmem>>, vector<1x256x256xbf16>
    %81 = vector.shape_cast %80 : vector<1x256x256xbf16> to vector<256x256xbf16>
    %cst_58 = arith.constant dense<0.000000e+00> : vector<8x256xf32>
    %82 = tpu.matmul %79, %81, %cst_58 {dimension_numbers = #tpu.dot_dimension_numbers<[1], [0], [0], [1], [0, 0, 1, 1], [], []>} : vector<8x256xbf16>, vector<256x256xbf16>, vector<8x256xf32> -> vector<8x256xf32>
    %c7_59 = arith.constant 7 : index
    %c0_60 = arith.constant 0 : index
    %c0_61 = arith.constant 0 : index
    %83 = vector.load %arg5[%c7_59, %c0_60, %c0_61] : memref<9x1x256xf32, #tpu.memory_space<vmem>>, vector<1x1x256xf32>
    %84 = vector.shape_cast %83 : vector<1x1x256xf32> to vector<1x256xf32>
    %85 = vector.broadcast %84 : vector<1x256xf32> to vector<8x256xf32>
    %86 = arith.addf %82, %85 : vector<8x256xf32>
    %cst_62 = arith.constant 0.000000e+00 : f32
    %87 = vector.broadcast %cst_62 : f32 to vector<8x256xf32>
    %88 = arith.maximumf %86, %87 : vector<8x256xf32>
    %89 = arith.truncf %88 : vector<8x256xf32> to vector<8x256xbf16>
    %c8 = arith.constant 8 : index
    %c0_63 = arith.constant 0 : index
    %c0_64 = arith.constant 0 : index
    %90 = vector.load %arg4[%c8, %c0_63, %c0_64] : memref<9x256x256xbf16, #tpu.memory_space<vmem>>, vector<1x256x256xbf16>
    %91 = vector.shape_cast %90 : vector<1x256x256xbf16> to vector<256x256xbf16>
    %cst_65 = arith.constant dense<0.000000e+00> : vector<8x256xf32>
    %92 = tpu.matmul %89, %91, %cst_65 {dimension_numbers = #tpu.dot_dimension_numbers<[1], [0], [0], [1], [0, 0, 1, 1], [], []>} : vector<8x256xbf16>, vector<256x256xbf16>, vector<8x256xf32> -> vector<8x256xf32>
    %c8_66 = arith.constant 8 : index
    %c0_67 = arith.constant 0 : index
    %c0_68 = arith.constant 0 : index
    %93 = vector.load %arg5[%c8_66, %c0_67, %c0_68] : memref<9x1x256xf32, #tpu.memory_space<vmem>>, vector<1x1x256xf32>
    %94 = vector.shape_cast %93 : vector<1x1x256xf32> to vector<1x256xf32>
    %95 = vector.broadcast %94 : vector<1x256xf32> to vector<8x256xf32>
    %96 = arith.addf %92, %95 : vector<8x256xf32>
    %cst_69 = arith.constant 0.000000e+00 : f32
    %97 = vector.broadcast %cst_69 : f32 to vector<8x256xf32>
    %98 = arith.maximumf %96, %97 : vector<8x256xf32>
    %99 = arith.truncf %98 : vector<8x256xf32> to vector<8x256xbf16>
    %c0_70 = arith.constant 0 : index
    %c0_71 = arith.constant 0 : index
    %100 = vector.load %arg6[%c0_70, %c0_71] : memref<256x128xbf16, #tpu.memory_space<vmem>>, vector<256x128xbf16>
    %cst_72 = arith.constant dense<0.000000e+00> : vector<8x128xf32>
    %101 = tpu.matmul %99, %100, %cst_72 {dimension_numbers = #tpu.dot_dimension_numbers<[1], [0], [0], [1], [0, 0, 1, 1], [], []>} : vector<8x256xbf16>, vector<256x128xbf16>, vector<8x128xf32> -> vector<8x128xf32>
    %c0_73 = arith.constant 0 : index
    %c0_74 = arith.constant 0 : index
    %102 = vector.load %arg7[%c0_73, %c0_74] : memref<1x128xf32, #tpu.memory_space<vmem>>, vector<1x128xf32>
    %103 = vector.broadcast %102 : vector<1x128xf32> to vector<8x128xf32>
    %104 = arith.addf %101, %103 : vector<8x128xf32>
    %c0_75 = arith.constant 0 : index
    %c0_76 = arith.constant 0 : index
    %105 = vector.load %arg8[%c0_75, %c0_76] : memref<8x128xf32, #tpu.memory_space<vmem>>, vector<8x128xf32>
    tpu.vector_store %arg8[%c0_75, %c0_76], %104 {strides = array<i32>} : memref<8x128xf32, #tpu.memory_space<vmem>>, vector<8x128xf32>,
    return
  }
  func.func @transform_0(%arg0: i32) -> (i32, i32) {
    %c0_i32 = arith.constant 0 : i32
    %c0_i32_0 = arith.constant 0 : i32
    return %arg0, %c0_i32 : i32, i32
  }
  func.func @transform_1(%arg0: i32) -> (i32, i32) {
    %c0_i32 = arith.constant 0 : i32
    %c0_i32_0 = arith.constant 0 : i32
    %c0_i32_1 = arith.constant 0 : i32
    return %c0_i32, %c0_i32_0 : i32, i32
  }
  func.func @transform_2(%arg0: i32) -> (i32, i32) {
    %c0_i32 = arith.constant 0 : i32
    %c0_i32_0 = arith.constant 0 : i32
    %c0_i32_1 = arith.constant 0 : i32
    return %c0_i32, %c0_i32_0 : i32, i32
  }
  func.func @transform_3(%arg0: i32) -> (i32, i32, i32) {
    %c0_i32 = arith.constant 0 : i32
    %c0_i32_0 = arith.constant 0 : i32
    %c0_i32_1 = arith.constant 0 : i32
    %c0_i32_2 = arith.constant 0 : i32
    return %c0_i32, %c0_i32_0, %c0_i32_1 : i32, i32, i32
  }
  func.func @transform_4(%arg0: i32) -> (i32, i32, i32) {
    %c0_i32 = arith.constant 0 : i32
    %c0_i32_0 = arith.constant 0 : i32
    %c0_i32_1 = arith.constant 0 : i32
    %c0_i32_2 = arith.constant 0 : i32
    return %c0_i32, %c0_i32_0, %c0_i32_1 : i32, i32, i32
  }
  func.func @transform_5(%arg0: i32) -> (i32, i32) {
    %c0_i32 = arith.constant 0 : i32
    %c0_i32_0 = arith.constant 0 : i32
    %c0_i32_1 = arith.constant 0 : i32
    return %c0_i32, %c0_i32_0 : i32, i32
  }
  func.func @transform_6(%arg0: i32) -> (i32, i32) {
    %c0_i32 = arith.constant 0 : i32
    %c0_i32_0 = arith.constant 0 : i32
    %c0_i32_1 = arith.constant 0 : i32
    return %c0_i32, %c0_i32_0 : i32, i32
  }
  func.func @transform_7(%arg0: i32) -> (i32, i32) {
    %c0_i32 = arith.constant 0 : i32
    %c0_i32_0 = arith.constant 0 : i32
    return %arg0, %c0_i32 : i32, i32
  }
}

</mosaic_0001>

<llo_original>
// kernel: relu_solution_forward.1
$region0: #{relu_solution_forward.1}
  #allocation0 [shape = 'u32[]', space=smem, size = 0x4, offset = 0x4, fixed_abs, tag = 'smem constant byte address 0x4 - core index']
  #allocation1 [shape = 'u32[144,128]{1,0:T(1,128)}', space=vmem, size = 0x12000, scoped, tag = 'internal scratch']
  %s0 = inlined_call_operand.hbm [shape: f32[8,784], index: 0, kind: input, shape index: {}]
  %s1 = inlined_call_operand.hbm [shape: bf16[784,256], index: 1, kind: input, shape index: {}]
  %s2 = inlined_call_operand.hbm [shape: f32[1,256], index: 2, kind: input, shape index: {}]
  %s3 = inlined_call_operand.hbm [shape: bf16[9,256,256], index: 3, kind: input, shape index: {}]
  %s4 = inlined_call_operand.hbm [shape: f32[9,1,256], index: 4, kind: input, shape index: {}]
  %s5 = inlined_call_operand.hbm [shape: bf16[256,128], index: 5, kind: input, shape index: {}]
  %s6 = inlined_call_operand.hbm [shape: f32[1,128], index: 6, kind: input, shape index: {}]
  %s7 = inlined_call_operand.hbm [shape: f32[8,128], index: 7, kind: output, shape index: {}]
  %s8 = sld [smem:[#allocation0]]
  $region66: #{relu_solution_forward.1} parent=0
    _
  %s10 = ssub.s32 1, %s8
  %s11 = scalar_select 0, %s10, %s8
  $region1: #{relu_solution_forward.1} parent=0
    #allocation2 [shape = 'u8[28672]{0}', space=vmem, size = 0x7000, scoped, tag = 'input window, operand 0, single buffered']
    #allocation3 [shape = 's32[1]{0}', space=sflag, size = 0x4, scoped, tag = 'scoped memory for relu_solution_forward.1']
    #allocation4 [shape = 's32[1]{0}', space=sflag, size = 0x4, scoped, tag = 'scoped memory for relu_solution_forward.1']
    #allocation5 [shape = 'u8[401408]{0}', space=vmem, size = 0x62000, scoped, tag = 'input window, operand 1, single buffered']
    #allocation6 [shape = 's32[1]{0}', space=sflag, size = 0x4, scoped, tag = 'scoped memory for relu_solution_forward.1']
    #allocation7 [shape = 'u8[1024]{0}', space=vmem, size = 0x400, scoped, tag = 'input window, operand 2, single buffered']
    #allocation8 [shape = 'u8[1179648]{0}', space=vmem, size = 0x120000, scoped, tag = 'input window, operand 3, single buffered']
    #allocation9 [shape = 's32[1]{0}', space=sflag, size = 0x4, scoped, tag = 'scoped memory for relu_solution_forward.1']
    #allocation10 [shape = 'u8[9216]{0}', space=vmem, size = 0x2400, scoped, tag = 'input window, operand 4, single buffered']
    #allocation11 [shape = 'u8[65536]{0}', space=vmem, size = 0x10000, scoped, tag = 'input window, operand 5, single buffered']
    #allocation12 [shape = 's32[1]{0}', space=sflag, size = 0x4, scoped, tag = 'scoped memory for relu_solution_forward.1']
    #allocation13 [shape = 'u8[512]{0}', space=vmem, size = 0x400, scoped, tag = 'input window, operand 6, single buffered']
    #allocation14 [shape = 'u8[4096]{0}', space=vmem, size = 0x1000, scoped, tag = 'output window, operand 0, single buffered']
    %12 = vsyncpa [#allocation3], 0
    %13 = vsyncpa [#allocation6], 0
    %14 = vsyncpa [#allocation9], 0
    %15 = vsyncpa [#allocation12], 0
    %16 = vsyncpa [#allocation4], 0
    // Predicated region
    $region2: #{relu_solution_forward.1} parent=1 // pred_check
      _
    $region3: #{relu_solution_forward.1} parent=1 // pred_check_branch
      %18 = sbr.rel (0) target = $region5
    $region4: #{relu_solution_forward.1} parent=1 // pred_region
      %s20 = ssub.s32 896, 896
      %21 = vsyncadd [#allocation3], %s20
      %s23 = sshll.u32 [#allocation2], 4
      %s24 = int_to_ptr.vmem [resolvable:$true] %s23
      %26 = dma.hbm_to_vmem [thread:$0]  %s0, 896, %s24, [#allocation3]
    $region5: #{relu_solution_forward.1} parent=1 // pred_fallthru
      _
    // Predicated region
    $region6: #{relu_solution_forward.1} parent=1 // pred_check
      _
    $region7: #{relu_solution_forward.1} parent=1 // pred_check_branch
      %28 = sbr.rel (0) target = $region9
    $region8: #{relu_solution_forward.1} parent=1 // pred_region
      %s30 = ssub.s32 12544, 12544
      %31 = vsyncadd [#allocation6], %s30
      %s32 = sshll.u32 [#allocation5], 4
      %s33 = int_to_ptr.vmem [resolvable:$true] %s32
      %38 = dma.hbm_to_vmem [thread:$0]  %s1, 12544, %s33, [#allocation6], 128, 128, 8
    $region9: #{relu_solution_forward.1} parent=1 // pred_fallthru
      _
    // Predicated region
    $region10: #{relu_solution_forward.1} parent=1 // pred_check
      _
    $region11: #{relu_solution_forward.1} parent=1 // pred_check_branch
      %40 = sbr.rel (0) target = $region13
    $region12: #{relu_solution_forward.1} parent=1 // pred_region
      %s42 = ssub.s32 32, 32
      %43 = vsyncadd [#allocation6], %s42
      %s45 = sshll.u32 [#allocation7], 4
      %s46 = int_to_ptr.vmem [resolvable:$true] %s45
      %48 = dma.hbm_to_vmem [thread:$0]  %s2, 32, %s46, [#allocation6]
    $region13: #{relu_solution_forward.1} parent=1 // pred_fallthru
      _
    // Predicated region
    $region14: #{relu_solution_forward.1} parent=1 // pred_check
      _
    $region15: #{relu_solution_forward.1} parent=1 // pred_check_branch
      %50 = sbr.rel (0) target = $region17
    $region16: #{relu_solution_forward.1} parent=1 // pred_region
      %s52 = ssub.s32 36864, 36864
      %53 = vsyncadd [#allocation9], %s52
      %s54 = sshll.u32 [#allocation8], 4
      %s55 = int_to_ptr.vmem [resolvable:$true] %s54
      %60 = dma.hbm_to_vmem [thread:$0]  %s3, 36864, %s55, [#allocation9], 128, 128, 8
    $region17: #{relu_solution_forward.1} parent=1 // pred_fallthru
      _
    // Predicated region
    $region18: #{relu_solution_forward.1} parent=1 // pred_check
      _
    $region19: #{relu_solution_forward.1} parent=1 // pred_check_branch
      %62 = sbr.rel (0) target = $region21
    $region20: #{relu_solution_forward.1} parent=1 // pred_region
      %s64 = ssub.s32 288, 288
      %65 = vsyncadd [#allocation9], %s64
      %s66 = sshll.u32 [#allocation10], 4
      %s67 = int_to_ptr.vmem [resolvable:$true] %s66
      %72 = dma.hbm_to_vmem [thread:$0]  %s4, 288, %s67, [#allocation9], 32, 32, 2
    $region21: #{relu_solution_forward.1} parent=1 // pred_fallthru
      _
    // Predicated region
    $region22: #{relu_solution_forward.1} parent=1 // pred_check
      _
    $region23: #{relu_solution_forward.1} parent=1 // pred_check_branch
      %74 = sbr.rel (0) target = $region25
    $region24: #{relu_solution_forward.1} parent=1 // pred_region
      %s76 = ssub.s32 2048, 2048
      %77 = vsyncadd [#allocation12], %s76
      %s78 = sshll.u32 [#allocation11], 4
      %s79 = int_to_ptr.vmem [resolvable:$true] %s78
      %84 = dma.hbm_to_vmem [thread:$0]  %s5, 2048, %s79, [#allocation12], 64, 64, 4
    $region25: #{relu_solution_forward.1} parent=1 // pred_fallthru
      _
    // Predicated region
    $region26: #{relu_solution_forward.1} parent=1 // pred_check
      _
    $region27: #{relu_solution_forward.1} parent=1 // pred_check_branch
      %86 = sbr.rel (0) target = $region29
    $region28: #{relu_solution_forward.1} parent=1 // pred_region
      %s88 = ssub.s32 16, 16
      %89 = vsyncadd [#allocation12], %s88
      %s91 = sshll.u32 [#allocation13], 4
      %s92 = int_to_ptr.vmem [resolvable:$true] %s91
      %94 = dma.hbm_to_vmem [thread:$0]  %s6, 16, %s92, [#allocation12]
    $region29: #{relu_solution_forward.1} parent=1 // pred_fallthru
      _
    // Predicated region
    $region30: #{relu_solution_forward.1} parent=1 // pred_check
      _
    $region31: #{relu_solution_forward.1} parent=1 // pred_check_branch
      %96 = sbr.rel (0) target = $region33
    $region32: #{relu_solution_forward.1} parent=1 // pred_region
      %97 = dma.done [#allocation3], 896
    $region33: #{relu_solution_forward.1} parent=1 // pred_fallthru
      _
    // Predicated region
    $region34: #{relu_solution_forward.1} parent=1 // pred_check
      _
    $region35: #{relu_solution_forward.1} parent=1 // pred_check_branch
      %99 = sbr.rel (0) target = $region37
    $region36: #{relu_solution_forward.1} parent=1 // pred_region
      %100 = dma.done [#allocation6], 12544
    $region37: #{relu_solution_forward.1} parent=1 // pred_fallthru
      _
    // Predicated region
    $region38: #{relu_solution_forward.1} parent=1 // pred_check
      _
    $region39: #{relu_solution_forward.1} parent=1 // pred_check_branch
      %102 = sbr.rel (0) target = $region41
    $region40: #{relu_solution_forward.1} parent=1 // pred_region
      %103 = dma.done [#allocation6], 32
    $region41: #{relu_solution_forward.1} parent=1 // pred_fallthru
      _
    // Predicated region
    $region42: #{relu_solution_forward.1} parent=1 // pred_check
      _
    $region43: #{relu_solution_forward.1} parent=1 // pred_check_branch
      %105 = sbr.rel (0) target = $region45
    $region44: #{relu_solution_forward.1} parent=1 // pred_region
      %106 = dma.done [#allocation9], 36864
    $region45: #{relu_solution_forward.1} parent=1 // pred_fallthru
      _
    // Predicated region
    $region46: #{relu_solution_forward.1} parent=1 // pred_check
      _
    $region47: #{relu_solution_forward.1} parent=1 // pred_check_branch
      %108 = sbr.rel (0) target = $region49
    $region48: #{relu_solution_forward.1} parent=1 // pred_region
      %109 = dma.done [#allocation9], 288
    $region49: #{relu_solution_forward.1} parent=1 // pred_fallthru
      _
    // Predicated region
    $region50: #{relu_solution_forward.1} parent=1 // pred_check
      _
    $region51: #{relu_solution_forward.1} parent=1 // pred_check_branch
      %111 = sbr.rel (0) target = $region53
    $region52: #{relu_solution_forward.1} parent=1 // pred_region
      %112 = dma.done [#allocation12], 2048
    $region53: #{relu_solution_forward.1} parent=1 // pred_fallthru
      _
    // Predicated region
    $region54: #{relu_solution_forward.1} parent=1 // pred_check
      _
    $region55: #{relu_solution_forward.1} parent=1 // pred_check_branch
      %114 = sbr.rel (0) target = $region57
    $region56: #{relu_solution_forward.1} parent=1 // pred_region
      %115 = dma.done [#allocation12], 16
    $region57: #{relu_solution_forward.1} parent=1 // pred_fallthru
      _
    %v117 = vld [vmem:[#allocation2] sm:$0xff]
    %v118 = vld [vmem:[#allocation2 + $0x8] sm:$0xff]
    %v119 = vld [vmem:[#allocation2 + $0x10] sm:$0xff]
    %v120 = vld [vmem:[#allocation2 + $0x18] sm:$0xff]
    %v121 = vld [vmem:[#allocation2 + $0x20] sm:$0xff]
    %v122 = vld [vmem:[#allocation2 + $0x28] sm:$0xff]
    %v123 = vld [vmem:[#allocation2 + $0x30] sm:$0xff]
    %v124 = vpack.c.bf16 %v117, %v117
    %v125 = vpack.c.bf16 %v118, %v118
    %v126 = vpack.c.bf16 %v119, %v119
    %v127 = vpack.c.bf16 %v120, %v120
    %v128 = vpack.c.bf16 %v121, %v121
    %v129 = vpack.c.bf16 %v122, %v122
    %v130 = vpack.c.bf16 %v123, %v123
    %v131 = vld [vmem:[#allocation5] sm:$0xff]
    %v132 = vld [vmem:[#allocation5 + $0x8] sm:$0xff]
    %v133 = vld [vmem:[#allocation5 + $0x10] sm:$0xff]
    %v134 = vld [vmem:[#allocation5 + $0x18] sm:$0xff]
    %v135 = vld [vmem:[#allocation5 + $0x20] sm:$0xff]
    %v136 = vld [vmem:[#allocation5 + $0x28] sm:$0xff]
    %v137 = vld [vmem:[#allocation5 + $0x30] sm:$0xff]
    %v138 = vld [vmem:[#allocation5 + $0x38] sm:$0xff]
    %v139 = vld [vmem:[#allocation5 + $0x40] sm:$0xff]
    %v140 = vld [vmem:[#allocation5 + $0x48] sm:$0xff]
    %v141 = vld [vmem:[#allocation5 + $0x50] sm:$0xff]
    %v142 = vld [vmem:[#allocation5 + $0x58] sm:$0xff]
    %v143 = vld [vmem:[#allocation5 + $0x60] sm:$0xff]
    %v144 = vld [vmem:[#allocation5 + $0x68] sm:$0xff]
    %v145 = vld [vmem:[#allocation5 + $0x70] sm:$0xff]
    %v146 = vld [vmem:[#allocation5 + $0x78] sm:$0xff]
    %v147 = vld [vmem:[#allocation5 + $0x80] sm:$0xff]
    %v148 = vld [vmem:[#allocation5 + $0x88] sm:$0xff]
    %v149 = vld [vmem:[#allocation5 + $0x90] sm:$0xff]
    %v150 = vld [vmem:[#allocation5 + $0x98] sm:$0xff]
    %v151 = vld [vmem:[#allocation5 + $0xa0] sm:$0xff]
    %v152 = vld [vmem:[#allocation5 + $0xa8] sm:$0xff]
    %v153 = vld [vmem:[#allocation5 + $0xb0] sm:$0xff]
    %v154 = vld [vmem:[#allocation5 + $0xb8] sm:$0xff]
    %v155 = vld [vmem:[#allocation5 + $0xc0] sm:$0xff]
    %v156 = vld [vmem:[#allocation5 + $0xc8] sm:$0xff]
    %v157 = vld [vmem:[#allocation5 + $0xd0] sm:$0xff]
    %v158 = vld [vmem:[#allocation5 + $0xd8] sm:$0xff]
    %v159 = vld [vmem:[#allocation5 + $0xe0] sm:$0xff]
    %v160 = vld [vmem:[#allocation5 + $0xe8] sm:$0xff]
    %v161 = vld [vmem:[#allocation5 + $0xf0] sm:$0xff]
    %v162 = vld [vmem:[#allocation5 + $0xf8] sm:$0xff]
    %v163 = vld [vmem:[#allocation5 + $0x100] sm:$0xff]
    %v164 = vld [vmem:[#allocation5 + $0x108] sm:$0xff]
    %v165 = vld [vmem:[#allocation5 + $0x110] sm:$0xff]
    %v166 = vld [vmem:[#allocation5 + $0x118] sm:$0xff]
    %v167 = vld [vmem:[#allocation5 + $0x120] sm:$0xff]
    %v168 = vld [vmem:[#allocation5 + $0x128] sm:$0xff]
    %v169 = vld [vmem:[#allocation5 + $0x130] sm:$0xff]
    %v170 = vld [vmem:[#allocation5 + $0x138] sm:$0xff]
    %v171 = vld [vmem:[#allocation5 + $0x140] sm:$0xff]
    %v172 = vld [vmem:[#allocation5 + $0x148] sm:$0xff]
    %v173 = vld [vmem:[#allocation5 + $0x150] sm:$0xff]
    %v174 = vld [vmem:[#allocation5 + $0x158] sm:$0xff]
    %v175 = vld [vmem:[#allocation5 + $0x160] sm:$0xff]
    %v176 = vld [vmem:[#allocation5 + $0x168] sm:$0xff]
    %v177 = vld [vmem:[#allocation5 + $0x170] sm:$0xff]
    %v178 = vld [vmem:[#allocation5 + $0x178] sm:$0xff]
    %v179 = vld [vmem:[#allocation5 + $0x180] sm:$0xff]
    %v180 = vld [vmem:[#allocation5 + $0x188] sm:$0xff]
    %v181 = vld [vmem:[#allocation5 + $0x190] sm:$0xff]
    %v182 = vld [vmem:[#allocation5 + $0x198] sm:$0xff]
    %v183 = vld [vmem:[#allocation5 + $0x1a0] sm:$0xff]
    %v184 = vld [vmem:[#allocation5 + $0x1a8] sm:$0xff]
    %v185 = vld [vmem:[#allocation5 + $0x1b0] sm:$0xff]
    %v186 = vld [vmem:[#allocation5 + $0x1b8] sm:$0xff]
    %v187 = vld [vmem:[#allocation5 + $0x1c0] sm:$0xff]
    %v188 = vld [vmem:[#allocation5 + $0x1c8] sm:$0xff]
    %v189 = vld [vmem:[#allocation5 + $0x1d0] sm:$0xff]
    %v190 = vld [vmem:[#allocation5 + $0x1d8] sm:$0xff]
    %v191 = vld [vmem:[#allocation5 + $0x1e0] sm:$0xff]
    %v192 = vld [vmem:[#allocation5 + $0x1e8] sm:$0xff]
    %v193 = vld [vmem:[#allocation5 + $0x1f0] sm:$0xff]
    %v194 = vld [vmem:[#allocation5 + $0x1f8] sm:$0xff]
    %v195 = vld [vmem:[#allocation5 + $0x200] sm:$0xff]
    %v196 = vld [vmem:[#allocation5 + $0x208] sm:$0xff]
    %v197 = vld [vmem:[#allocation5 + $0x210] sm:$0xff]
    %v198 = vld [vmem:[#allocation5 + $0x218] sm:$0xff]
    %v199 = vld [vmem:[#allocation5 + $0x220] sm:$0xff]
    %v200 = vld [vmem:[#allocation5 + $0x228] sm:$0xff]
    %v201 = vld [vmem:[#allocation5 + $0x230] sm:$0xff]
    %v202 = vld [vmem:[#allocation5 + $0x238] sm:$0xff]
    %v203 = vld [vmem:[#allocation5 + $0x240] sm:$0xff]
    %v204 = vld [vmem:[#allocation5 + $0x248] sm:$0xff]
    %v205 = vld [vmem:[#allocation5 + $0x250] sm:$0xff]
    %v206 = vld [vmem:[#allocation5 + $0x258] sm:$0xff]
    %v207 = vld [vmem:[#allocation5 + $0x260] sm:$0xff]
    %v208 = vld [vmem:[#allocation5 + $0x268] sm:$0xff]
    %v209 = vld [vmem:[#allocation5 + $0x270] sm:$0xff]
    %v210 = vld [vmem:[#allocation5 + $0x278] sm:$0xff]
    %v211 = vld [vmem:[#allocation5 + $0x280] sm:$0xff]
    %v212 = vld [vmem:[#allocation5 + $0x288] sm:$0xff]
    %v213 = vld [vmem:[#allocation5 + $0x290] sm:$0xff]
    %v214 = vld [vmem:[#allocation5 + $0x298] sm:$0xff]
    %v215 = vld [vmem:[#allocation5 + $0x2a0] sm:$0xff]
    %v216 = vld [vmem:[#allocation5 + $0x2a8] sm:$0xff]
    %v217 = vld [vmem:[#allocation5 + $0x2b0] sm:$0xff]
    %v218 = vld [vmem:[#allocation5 + $0x2b8] sm:$0xff]
    %v219 = vld [vmem:[#allocation5 + $0x2c0] sm:$0xff]
    %v220 = vld [vmem:[#allocation5 + $0x2c8] sm:$0xff]
    %v221 = vld [vmem:[#allocation5 + $0x2d0] sm:$0xff]
    %v222 = vld [vmem:[#allocation5 + $0x2d8] sm:$0xff]
    %v223 = vld [vmem:[#allocation5 + $0x2e0] sm:$0xff]
    %v224 = vld [vmem:[#allocation5 + $0x2e8] sm:$0xff]
    %v225 = vld [vmem:[#allocation5 + $0x2f0] sm:$0xff]
    %v226 = vld [vmem:[#allocation5 + $0x2f8] sm:$0xff]
    %v227 = vld [vmem:[#allocation5 + $0x300] sm:$0xff]
    %v228 = vld [vmem:[#allocation5 + $0x308] sm:$0xff]
    %v229 = vld [vmem:[#allocation7] sm:$0x3]
    %v231 = vlaneseq
    %v232 = vshrl.u32 %v231, 7
    %v233 = vsub.s32 0, %v232
    %v234 = vrot.slane %v229, %v233
    %v235 = vlaneseq
    %v236 = vshrl.u32 %v235, 7
    %v237 = vsub.s32 1, %v236
    %v238 = vrot.slane %v229, %v237
    %v339 = vunpack.c.l.b16 %v131
    %v340 = vunpack.c.h.b16 %v131
    %v341 = vunpack.c.l.b16 %v132
    %v342 = vunpack.c.h.b16 %v132
    %v343 = vunpack.c.l.b16 %v133
    %v344 = vunpack.c.h.b16 %v133
    %v345 = vunpack.c.l.b16 %v134
    %v346 = vunpack.c.h.b16 %v134
    %v347 = vunpack.c.l.b16 %v135
    %v348 = vunpack.c.h.b16 %v135
    %v349 = vunpack.c.l.b16 %v136
    %v350 = vunpack.c.h.b16 %v136
    %v351 = vunpack.c.l.b16 %v137
    %v352 = vunpack.c.h.b16 %v137
    %v353 = vunpack.c.l.b16 %v138
    %v354 = vunpack.c.h.b16 %v138
    %v355 = vunpack.c.l.b16 %v139
    %v356 = vunpack.c.h.b16 %v139
    %v357 = vunpack.c.l.b16 %v140
    %v358 = vunpack.c.h.b16 %v140
    %v359 = vunpack.c.l.b16 %v141
    %v360 = vunpack.c.h.b16 %v141
    %v361 = vunpack.c.l.b16 %v142
    %v362 = vunpack.c.h.b16 %v142
    %v363 = vunpack.c.l.b16 %v143
    %v364 = vunpack.c.h.b16 %v143
    %v365 = vunpack.c.l.b16 %v144
    %v366 = vunpack.c.h.b16 %v144
    %v367 = vunpack.c.l.b16 %v145
    %v368 = vunpack.c.h.b16 %v145
    %v369 = vunpack.c.l.b16 %v146
    %v370 = vunpack.c.h.b16 %v146
    %v371 = vunpack.c.l.b16 %v147
    %v372 = vunpack.c.h.b16 %v147
    %v373 = vunpack.c.l.b16 %v148
    %v374 = vunpack.c.h.b16 %v148
    %v375 = vunpack.c.l.b16 %v149
    %v376 = vunpack.c.h.b16 %v149
    %v377 = vunpack.c.l.b16 %v150
    %v378 = vunpack.c.h.b16 %v150
    %v379 = vunpack.c.l.b16 %v151
    %v380 = vunpack.c.h.b16 %v151
    %v381 = vunpack.c.l.b16 %v152
    %v382 = vunpack.c.h.b16 %v152
    %v383 = vunpack.c.l.b16 %v153
    %v384 = vunpack.c.h.b16 %v153
    %v385 = vunpack.c.l.b16 %v154
    %v386 = vunpack.c.h.b16 %v154
    %v387 = vunpack.c.l.b16 %v155
    %v388 = vunpack.c.h.b16 %v155
    %v389 = vunpack.c.l.b16 %v156
    %v390 = vunpack.c.h.b16 %v156
    %v391 = vunpack.c.l.b16 %v157
    %v392 = vunpack.c.h.b16 %v157
    %v393 = vunpack.c.l.b16 %v158
    %v394 = vunpack.c.h.b16 %v158
    %v395 = vunpack.c.l.b16 %v159
    %v396 = vunpack.c.h.b16 %v159
    %v397 = vunpack.c.l.b16 %v160
    %v398 = vunpack.c.h.b16 %v160
    %v399 = vunpack.c.l.b16 %v161
    %v400 = vunpack.c.h.b16 %v161
    %v401 = vunpack.c.l.b16 %v162
    %v402 = vunpack.c.h.b16 %v162
    %v403 = vunpack.c.l.b16 %v163
    %v404 = vunpack.c.h.b16 %v163
    %v405 = vunpack.c.l.b16 %v164
    %v406 = vunpack.c.h.b16 %v164
    %v407 = vunpack.c.l.b16 %v165
    %v408 = vunpack.c.h.b16 %v165
    %v409 = vunpack.c.l.b16 %v166
    %v410 = vunpack.c.h.b16 %v166
    %v411 = vunpack.c.l.b16 %v167
    %v412 = vunpack.c.h.b16 %v167
    %v413 = vunpack.c.l.b16 %v168
    %v414 = vunpack.c.h.b16 %v168
    %v415 = vunpack.c.l.b16 %v169
    %v416 = vunpack.c.h.b16 %v169
    %v417 = vunpack.c.l.b16 %v170
    %v418 = vunpack.c.h.b16 %v170
    %v419 = vunpack.c.l.b16 %v171
    %v420 = vunpack.c.h.b16 %v171
    %v421 = vunpack.c.l.b16 %v172
    %v422 = vunpack.c.h.b16 %v172
    %v423 = vunpack.c.l.b16 %v173
    %v424 = vunpack.c.h.b16 %v173
    %v425 = vunpack.c.l.b16 %v174
    %v426 = vunpack.c.h.b16 %v174
    %v427 = vunpack.c.l.b16 %v175
    %v428 = vunpack.c.h.b16 %v175
    %v429 = vunpack.c.l.b16 %v176
    %v430 = vunpack.c.h.b16 %v176
    %v431 = vunpack.c.l.b16 %v177
    %v432 = vunpack.c.h.b16 %v177
    %v433 = vunpack.c.l.b16 %v178
    %v434 = vunpack.c.h.b16 %v178
    %v435 = vunpack.c.l.b16 %v179
    %v436 = vunpack.c.h.b16 %v179
    %v437 = vunpack.c.l.b16 %v180
    %v438 = vunpack.c.h.b16 %v180
    %v439 = vunpack.c.l.b16 %v181
    %v440 = vunpack.c.h.b16 %v181
    %v441 = vunpack.c.l.b16 %v182
    %v442 = vunpack.c.h.b16 %v182
    %v443 = vunpack.c.l.b16 %v183
    %v444 = vunpack.c.h.b16 %v183
    %v445 = vunpack.c.l.b16 %v184
    %v446 = vunpack.c.h.b16 %v184
    %v447 = vunpack.c.l.b16 %v185
    %v448 = vunpack.c.h.b16 %v185
    %v449 = vunpack.c.l.b16 %v186
    %v450 = vunpack.c.h.b16 %v186
    %v451 = vunpack.c.l.b16 %v187
    %v452 = vunpack.c.h.b16 %v187
    %v453 = vunpack.c.l.b16 %v188
    %v454 = vunpack.c.h.b16 %v188
    %v455 = vunpack.c.l.b16 %v189
    %v456 = vunpack.c.h.b16 %v189
    %v457 = vunpack.c.l.b16 %v190
    %v458 = vunpack.c.h.b16 %v190
    %v459 = vunpack.c.l.b16 %v191
    %v460 = vunpack.c.h.b16 %v191
    %v461 = vunpack.c.l.b16 %v192
    %v462 = vunpack.c.h.b16 %v192
    %v463 = vunpack.c.l.b16 %v193
    %v464 = vunpack.c.h.b16 %v193
    %v465 = vunpack.c.l.b16 %v194
    %v466 = vunpack.c.h.b16 %v194
    %v467 = vunpack.c.l.b16 %v195
    %v468 = vunpack.c.h.b16 %v195
    %v469 = vunpack.c.l.b16 %v196
    %v470 = vunpack.c.h.b16 %v196
    %v471 = vunpack.c.l.b16 %v197
    %v472 = vunpack.c.h.b16 %v197
    %v473 = vunpack.c.l.b16 %v198
    %v474 = vunpack.c.h.b16 %v198
    %v475 = vunpack.c.l.b16 %v199
    %v476 = vunpack.c.h.b16 %v199
    %v477 = vunpack.c.l.b16 %v200
    %v478 = vunpack.c.h.b16 %v200
    %v479 = vunpack.c.l.b16 %v201
    %v480 = vunpack.c.h.b16 %v201
    %v481 = vunpack.c.l.b16 %v202
    %v482 = vunpack.c.h.b16 %v202
    %v483 = vunpack.c.l.b16 %v203
    %v484 = vunpack.c.h.b16 %v203
    %v485 = vunpack.c.l.b16 %v204
    %v486 = vunpack.c.h.b16 %v204
    %v487 = vunpack.c.l.b16 %v205
    %v488 = vunpack.c.h.b16 %v205
    %v489 = vunpack.c.l.b16 %v206
    %v490 = vunpack.c.h.b16 %v206
    %v491 = vunpack.c.l.b16 %v207
    %v492 = vunpack.c.h.b16 %v207
    %v493 = vunpack.c.l.b16 %v208
    %v494 = vunpack.c.h.b16 %v208
    %v495 = vunpack.c.l.b16 %v209
    %v496 = vunpack.c.h.b16 %v209
    %v497 = vunpack.c.l.b16 %v210
    %v498 = vunpack.c.h.b16 %v210
    %v499 = vunpack.c.l.b16 %v211
    %v500 = vunpack.c.h.b16 %v211
    %v501 = vunpack.c.l.b16 %v212
    %v502 = vunpack.c.h.b16 %v212
    %v503 = vunpack.c.l.b16 %v213
    %v504 = vunpack.c.h.b16 %v213
    %v505 = vunpack.c.l.b16 %v214
    %v506 = vunpack.c.h.b16 %v214
    %v507 = vunpack.c.l.b16 %v215
    %v508 = vunpack.c.h.b16 %v215
    %v509 = vunpack.c.l.b16 %v216
    %v510 = vunpack.c.h.b16 %v216
    %v511 = vunpack.c.l.b16 %v217
    %v512 = vunpack.c.h.b16 %v217
    %v513 = vunpack.c.l.b16 %v218
    %v514 = vunpack.c.h.b16 %v218
    %v515 = vunpack.c.l.b16 %v219
    %v516 = vunpack.c.h.b16 %v219
    %v517 = vunpack.c.l.b16 %v220
    %v518 = vunpack.c.h.b16 %v220
    %v519 = vunpack.c.l.b16 %v221
    %v520 = vunpack.c.h.b16 %v221
    %v521 = vunpack.c.l.b16 %v222
    %v522 = vunpack.c.h.b16 %v222
    %v523 = vunpack.c.l.b16 %v223
    %v524 = vunpack.c.h.b16 %v223
    %v525 = vunpack.c.l.b16 %v224
    %v526 = vunpack.c.h.b16 %v224
    %v527 = vunpack.c.l.b16 %v225
    %v528 = vunpack.c.h.b16 %v225
    %v529 = vunpack.c.l.b16 %v226
    %v530 = vunpack.c.h.b16 %v226
    %v531 = vunpack.c.l.b16 %v227
    %v532 = vunpack.c.h.b16 %v227
    %v533 = vunpack.c.l.b16 %v228
    %v534 = vunpack.c.h.b16 %v228
    %v535 = vpack.c.b16 %v341, %v339
    %v536 = vpack.c.b16 %v342, %v340
    %v537 = vpack.c.b16 %v345, %v343
    %v538 = vpack.c.b16 %v346, %v344
    %v539 = vpack.c.b16 %v349, %v347
    %v540 = vpack.c.b16 %v350, %v348
    %v541 = vpack.c.b16 %v353, %v351
    %v542 = vpack.c.b16 %v354, %v352
    %v543 = vpack.c.b16 %v357, %v355
    %v544 = vpack.c.b16 %v358, %v356
    %v545 = vpack.c.b16 %v361, %v359
    %v546 = vpack.c.b16 %v362, %v360
    %v547 = vpack.c.b16 %v365, %v363
    %v548 = vpack.c.b16 %v366, %v364
    %v549 = vpack.c.b16 %v369, %v367
    %v550 = vpack.c.b16 %v370, %v368
    %v551 = vpack.c.b16 %v373, %v371
    %v552 = vpack.c.b16 %v374, %v372
    %v553 = vpack.c.b16 %v377, %v375
    %v554 = vpack.c.b16 %v378, %v376
    %v555 = vpack.c.b16 %v381, %v379
    %v556 = vpack.c.b16 %v382, %v380
    %v557 = vpack.c.b16 %v385, %v383
    %v558 = vpack.c.b16 %v386, %v384
    %v559 = vpack.c.b16 %v389, %v387
    %v560 = vpack.c.b16 %v390, %v388
    %v561 = vpack.c.b16 %v393, %v391
    %v562 = vpack.c.b16 %v394, %v392
    %v563 = vpack.c.b16 %v397, %v395
    %v564 = vpack.c.b16 %v398, %v396
    %v565 = vpack.c.b16 %v401, %v399
    %v566 = vpack.c.b16 %v402, %v400
    %v567 = vpack.c.b16 %v405, %v403
    %v568 = vpack.c.b16 %v406, %v404
    %v569 = vpack.c.b16 %v409, %v407
    %v570 = vpack.c.b16 %v410, %v408
    %v571 = vpack.c.b16 %v413, %v411
    %v572 = vpack.c.b16 %v414, %v412
    %v573 = vpack.c.b16 %v417, %v415
    %v574 = vpack.c.b16 %v418, %v416
    %v575 = vpack.c.b16 %v421, %v419
    %v576 = vpack.c.b16 %v422, %v420
    %v577 = vpack.c.b16 %v425, %v423
    %v578 = vpack.c.b16 %v426, %v424
    %v579 = vpack.c.b16 %v429, %v427
    %v580 = vpack.c.b16 %v430, %v428
    %v581 = vpack.c.b16 %v433, %v431
    %v582 = vpack.c.b16 %v434, %v432
    %v583 = vpack.c.b16 %v437, %v435
    %v584 = vpack.c.b16 %v438, %v436
    %v585 = vpack.c.b16 %v441, %v439
    %v586 = vpack.c.b16 %v442, %v440
    %v587 = vpack.c.b16 %v445, %v443
    %v588 = vpack.c.b16 %v446, %v444
    %v589 = vpack.c.b16 %v449, %v447
    %v590 = vpack.c.b16 %v450, %v448
    %v591 = vpack.c.b16 %v453, %v451
    %v592 = vpack.c.b16 %v454, %v452
    %v593 = vpack.c.b16 %v457, %v455
    %v594 = vpack.c.b16 %v458, %v456
    %v595 = vpack.c.b16 %v461, %v459
    %v596 = vpack.c.b16 %v462, %v460
    %v597 = vpack.c.b16 %v465, %v463
    %v598 = vpack.c.b16 %v466, %v464
    %v599 = vpack.c.b16 %v469, %v467
    %v600 = vpack.c.b16 %v470, %v468
    %v601 = vpack.c.b16 %v473, %v471
    %v602 = vpack.c.b16 %v474, %v472
    %v603 = vpack.c.b16 %v477, %v475
    %v604 = vpack.c.b16 %v478, %v476
    %v605 = vpack.c.b16 %v481, %v479
    %v606 = vpack.c.b16 %v482, %v480
    %v607 = vpack.c.b16 %v485, %v483
    %v608 = vpack.c.b16 %v486, %v484
    %v609 = vpack.c.b16 %v489, %v487
    %v610 = vpack.c.b16 %v490, %v488
    %v611 = vpack.c.b16 %v493, %v491
    %v612 = vpack.c.b16 %v494, %v492
    %v613 = vpack.c.b16 %v497, %v495
    %v614 = vpack.c.b16 %v498, %v496
    %v615 = vpack.c.b16 %v501, %v499
    %v616 = vpack.c.b16 %v502, %v500
    %v617 = vpack.c.b16 %v505, %v503
    %v618 = vpack.c.b16 %v506, %v504
    %v619 = vpack.c.b16 %v509, %v507
    %v620 = vpack.c.b16 %v510, %v508
    %v621 = vpack.c.b16 %v513, %v511
    %v622 = vpack.c.b16 %v514, %v512
    %v623 = vpack.c.b16 %v517, %v515
    %v624 = vpack.c.b16 %v518, %v516
    %v625 = vpack.c.b16 %v521, %v519
    %v626 = vpack.c.b16 %v522, %v520
    %v627 = vpack.c.b16 %v525, %v523
    %v628 = vpack.c.b16 %v526, %v524
    %v629 = vpack.c.b16 %v529, %v527
    %v630 = vpack.c.b16 %v530, %v528
    %v631 = vpack.c.b16 %v533, %v531
    %v632 = vpack.c.b16 %v534, %v532
    %vm731 = vcmask 130048
    %v733 = vsel %vm731, %v130, 0
    %735 = vmatprep.subr.bf16.mxu0 %v536
    %736 = vmatpush1.bf16.msra.mxu0 %v535
    %737 = vmatprep.subr.bf16.mxu0 %v538
    %738 = vmatpush1.bf16.msra.mxu0 %v537
    %739 = vmatprep.subr.bf16.mxu0 %v540
    %740 = vmatpush1.bf16.msra.mxu0 %v539
    %741 = vmatprep.subr.bf16.mxu0 %v542
    %742 = vmatpush1.bf16.msra.mxu0 %v541
    %743 = vmatprep.subr.bf16.mxu0 %v544
    %744 = vmatpush1.bf16.msra.mxu0 %v543
    %745 = vmatprep.subr.bf16.mxu0 %v546
    %746 = vmatpush1.bf16.msra.mxu0 %v545
    %747 = vmatprep.subr.bf16.mxu0 %v548
    %748 = vmatpush1.bf16.msra.mxu0 %v547
    %749 = vmatprep.subr.bf16.mxu0 %v550
    %750 = vmatpush1.bf16.msra.mxu0 %v549
    %751 = vmatprep.subr.bf16.mxu0 %v552
    %752 = vmatpush1.bf16.msra.mxu0 %v551
    %753 = vmatprep.subr.bf16.mxu0 %v554
    %754 = vmatpush1.bf16.msra.mxu0 %v553
    %755 = vmatprep.subr.bf16.mxu0 %v556
    %756 = vmatpush1.bf16.msra.mxu0 %v555
    %757 = vmatprep.subr.bf16.mxu0 %v558
    %758 = vmatpush1.bf16.msra.mxu0 %v557
    %759 = vmatprep.subr.bf16.mxu0 %v560
    %760 = vmatpush1.bf16.msra.mxu0 %v559
    %761 = vmatprep.subr.bf16.mxu0 %v562
    %762 = vmatpush1.bf16.msra.mxu0 %v561
    %763 = vmatprep.subr.bf16.mxu0 %v564
    %764 = vmatpush1.bf16.msra.mxu0 %v563
    %765 = vmatprep.subr.bf16.mxu0 %v566
    %766 = vmatpush1.bf16.msra.mxu0 %v565
    %767 = vmatprep.mubr.bf16.mxu0 %v125
    %768 = vmatmul.mubr.bf16.gmra.mrb[0].mxu0 %v124
    %v769 = vpop.f32.mrb[0].mxu0
    %v770 = vadd.f32 %v234, %v769
    %v771 = vpop.f32.mrb[0].mxu0
    %v772 = vadd.f32 %v238, %v771
    %v773 = vpop.f32.mrb[0].mxu0
    %v774 = vpop.f32.mrb[0].mxu0
    %775 = vdwg.mxu0
    %776 = vmatprep.subr.bf16.mxu0 %v568
    %777 = vmatpush1.bf16.msra.mxu0 %v567
    %778 = vmatprep.subr.bf16.mxu0 %v570
    %779 = vmatpush1.bf16.msra.mxu0 %v569
    %780 = vmatprep.subr.bf16.mxu0 %v572
    %781 = vmatpush1.bf16.msra.mxu0 %v571
    %782 = vmatprep.subr.bf16.mxu0 %v574
    %783 = vmatpush1.bf16.msra.mxu0 %v573
    %784 = vmatprep.subr.bf16.mxu0 %v576
    %785 = vmatpush1.bf16.msra.mxu0 %v575
    %786 = vmatprep.subr.bf16.mxu0 %v578
    %787 = vmatpush1.bf16.msra.mxu0 %v577
    %788 = vmatprep.subr.bf16.mxu0 %v580
    %789 = vmatpush1.bf16.msra.mxu0 %v579
    %790 = vmatprep.subr.bf16.mxu0 %v582
    %791 = vmatpush1.bf16.msra.mxu0 %v581
    %792 = vmatprep.subr.bf16.mxu0 %v584
    %793 = vmatpush1.bf16.msra.mxu0 %v583
    %794 = vmatprep.subr.bf16.mxu0 %v586
    %795 = vmatpush1.bf16.msra.mxu0 %v585
    %796 = vmatprep.subr.bf16.mxu0 %v588
    %797 = vmatpush1.bf16.msra.mxu0 %v587
    %798 = vmatprep.subr.bf16.mxu0 %v590
    %799 = vmatpush1.bf16.msra.mxu0 %v589
    %800 = vmatprep.subr.bf16.mxu0 %v592
    %801 = vmatpush1.bf16.msra.mxu0 %v591
    %802 = vmatprep.subr.bf16.mxu0 %v594
    %803 = vmatpush1.bf16.msra.mxu0 %v593
    %804 = vmatprep.subr.bf16.mxu0 %v596
    %805 = vmatpush1.bf16.msra.mxu0 %v595
    %806 = vmatprep.subr.bf16.mxu0 %v598
    %807 = vmatpush1.bf16.msra.mxu0 %v597
    %808 = vmatprep.mubr.bf16.mxu0 %v127
    %809 = vmatmul.mubr.bf16.gmra.mrb[0].mxu0 %v126
    %v810 = vpop.f32.mrb[0].mxu0
    %v811 = vadd.f32 %v770, %v810
    %v812 = vpop.f32.mrb[0].mxu0
    %v813 = vadd.f32 %v772, %v812
    %v814 = vpop.f32.mrb[0].mxu0
    %v815 = vpop.f32.mrb[0].mxu0
    %816 = vdwg.mxu0
    %817 = vmatprep.subr.bf16.mxu0 %v600
    %818 = vmatpush1.bf16.msra.mxu0 %v599
    %819 = vmatprep.subr.bf16.mxu0 %v602
    %820 = vmatpush1.bf16.msra.mxu0 %v601
    %821 = vmatprep.subr.bf16.mxu0 %v604
    %822 = vmatpush1.bf16.msra.mxu0 %v603
    %823 = vmatprep.subr.bf16.mxu0 %v606
    %824 = vmatpush1.bf16.msra.mxu0 %v605
    %825 = vmatprep.subr.bf16.mxu0 %v608
    %826 = vmatpush1.bf16.msra.mxu0 %v607
    %827 = vmatprep.subr.bf16.mxu0 %v610
    %828 = vmatpush1.bf16.msra.mxu0 %v609
    %829 = vmatprep.subr.bf16.mxu0 %v612
    %830 = vmatpush1.bf16.msra.mxu0 %v611
    %831 = vmatprep.subr.bf16.mxu0 %v614
    %832 = vmatpush1.bf16.msra.mxu0 %v613
    %833 = vmatprep.subr.bf16.mxu0 %v616
    %834 = vmatpush1.bf16.msra.mxu0 %v615
    %835 = vmatprep.subr.bf16.mxu0 %v618
    %836 = vmatpush1.bf16.msra.mxu0 %v617
    %837 = vmatprep.subr.bf16.mxu0 %v620
    %838 = vmatpush1.bf16.msra.mxu0 %v619
    %839 = vmatprep.subr.bf16.mxu0 %v622
    %840 = vmatpush1.bf16.msra.mxu0 %v621
    %841 = vmatprep.subr.bf16.mxu0 %v624
    %842 = vmatpush1.bf16.msra.mxu0 %v623
    %843 = vmatprep.subr.bf16.mxu0 %v626
    %844 = vmatpush1.bf16.msra.mxu0 %v625
    %845 = vmatprep.subr.bf16.mxu0 %v628
    %846 = vmatpush1.bf16.msra.mxu0 %v627
    %847 = vmatprep.subr.bf16.mxu0 %v630
    %848 = vmatpush1.bf16.msra.mxu0 %v629
    %849 = vmatprep.mubr.bf16.mxu0 %v129
    %850 = vmatmul.mubr.bf16.gmra.mrb[0].mxu0 %v128
    %v851 = vpop.f32.mrb[0].mxu0
    %v852 = vadd.f32 %v811, %v851
    %v853 = vpop.f32.mrb[0].mxu0
    %v854 = vadd.f32 %v813, %v853
    %v855 = vpop.f32.mrb[0].mxu0
    %v856 = vpop.f32.mrb[0].mxu0
    %857 = vdwg.mxu0
    %858 = vmatprep.subr.bf16.mxu0 %v632
    %859 = vmatpush1.bf16.msra.mxu0 %v631
    %860 = vmatprep.subr.bf16.mxu0 0
    %861 = vmatpush1.bf16.msra.mxu0 0
    %862 = vmatprep.subr.bf16.mxu0 0
    %863 = vmatpush1.bf16.msra.mxu0 0
    %864 = vmatprep.subr.bf16.mxu0 0
    %865 = vmatpush1.bf16.msra.mxu0 0
    %866 = vmatprep.subr.bf16.mxu0 0
    %867 = vmatpush1.bf16.msra.mxu0 0
    %868 = vmatprep.subr.bf16.mxu0 0
    %869 = vmatpush1.bf16.msra.mxu0 0
    %870 = vmatprep.subr.bf16.mxu0 0
    %871 = vmatpush1.bf16.msra.mxu0 0
    %872 = vmatprep.subr.bf16.mxu0 0
    %873 = vmatpush1.bf16.msra.mxu0 0
    %874 = vmatprep.subr.bf16.mxu0 0
    %875 = vmatpush1.bf16.msra.mxu0 0
    %876 = vmatprep.subr.bf16.mxu0 0
    %877 = vmatpush1.bf16.msra.mxu0 0
    %878 = vmatprep.subr.bf16.mxu0 0
    %879 = vmatpush1.bf16.msra.mxu0 0
    %880 = vmatprep.subr.bf16.mxu0 0
    %881 = vmatpush1.bf16.msra.mxu0 0
    %882 = vmatprep.subr.bf16.mxu0 0
    %883 = vmatpush1.bf16.msra.mxu0 0
    %884 = vmatprep.subr.bf16.mxu0 0
    %885 = vmatpush1.bf16.msra.mxu0 0
    %886 = vmatprep.subr.bf16.mxu0 0
    %887 = vmatpush1.bf16.msra.mxu0 0
    %888 = vmatprep.subr.bf16.mxu0 0
    %889 = vmatpush1.bf16.msra.mxu0 0
    %890 = vmatprep.mubr.bf16.mxu0 0
    %891 = vmatmul.mubr.bf16.gmra.mrb[0].mxu0 %v733
    %v892 = vpop.f32.mrb[0].mxu0
    %v893 = vadd.f32 %v852, %v892
    %v894 = vpop.f32.mrb[0].mxu0
    %v895 = vadd.f32 %v854, %v894
    %v896 = vpop.f32.mrb[0].mxu0
    %v897 = vpop.f32.mrb[0].mxu0
    %898 = vdwg.mxu0
    %v899 = vmax.f32 %v893, 0.0
    %v900 = vmax.f32 %v895, 0.0
    %v901 = vpack.c.bf16 %v899, %v899
    %v902 = vpack.c.bf16 %v900, %v900
    %v903 = vld [vmem:[#allocation8] sm:$0xff]
    %v904 = vld [vmem:[#allocation8 + $0x8] sm:$0xff]
    %v905 = vld [vmem:[#allocation8 + $0x10] sm:$0xff]
    %v906 = vld [vmem:[#allocation8 + $0x18] sm:$0xff]
    %v907 = vld [vmem:[#allocation8 + $0x20] sm:$0xff]
    %v908 = vld [vmem:[#allocation8 + $0x28] sm:$0xff]
    %v909 = vld [vmem:[#allocation8 + $0x30] sm:$0xff]
    %v910 = vld [vmem:[#allocation8 + $0x38] sm:$0xff]
    %v911 = vld [vmem:[#allocation8 + $0x40] sm:$0xff]
    %v912 = vld [vmem:[#allocation8 + $0x48] sm:$0xff]
    %v913 = vld [vmem:[#allocation8 + $0x50] sm:$0xff]
    %v914 = vld [vmem:[#allocation8 + $0x58] sm:$0xff]
    %v915 = vld [vmem:[#allocation8 + $0x60] sm:$0xff]
    %v916 = vld [vmem:[#allocation8 + $0x68] sm:$0xff]
    %v917 = vld [vmem:[#allocation8 + $0x70] sm:$0xff]
    %v918 = vld [vmem:[#allocation8 + $0x78] sm:$0xff]
    %v919 = vld [vmem:[#allocation8 + $0x80] sm:$0xff]
    %v920 = vld [vmem:[#allocation8 + $0x88] sm:$0xff]
    %v921 = vld [vmem:[#allocation8 + $0x90] sm:$0xff]
    %v922 = vld [vmem:[#allocation8 + $0x98] sm:$0xff]
    %v923 = vld [vmem:[#allocation8 + $0xa0] sm:$0xff]
    %v924 = vld [vmem:[#allocation8 + $0xa8] sm:$0xff]
    %v925 = vld [vmem:[#allocation8 + $0xb0] sm:$0xff]
    %v926 = vld [vmem:[#allocation8 + $0xb8] sm:$0xff]
    %v927 = vld [vmem:[#allocation8 + $0xc0] sm:$0xff]
    %v928 = vld [vmem:[#allocation8 + $0xc8] sm:$0xff]
    %v929 = vld [vmem:[#allocation8 + $0xd0] sm:$0xff]
    %v930 = vld [vmem:[#allocation8 + $0xd8] sm:$0xff]
    %v931 = vld [vmem:[#allocation8 + $0xe0] sm:$0xff]
    %v932 = vld [vmem:[#allocation8 + $0xe8] sm:$0xff]
    %v933 = vld [vmem:[#allocation8 + $0xf0] sm:$0xff]
    %v934 = vld [vmem:[#allocation8 + $0xf8] sm:$0xff]
    %v935 = vld [vmem:[#allocation10] sm:$0x3]
    %v937 = vlaneseq
    %v938 = vshrl.u32 %v937, 7
    %v939 = vsub.s32 0, %v938
    %v940 = vrot.slane %v935, %v939
    %v941 = vlaneseq
    %v942 = vshrl.u32 %v941, 7
    %v943 = vsub.s32 1, %v942
    %v944 = vrot.slane %v935, %v943
    %v979 = vunpack.c.l.b16 %v903
    %v980 = vunpack.c.h.b16 %v903
    %v981 = vunpack.c.l.b16 %v904
    %v982 = vunpack.c.h.b16 %v904
    %v983 = vunpack.c.l.b16 %v905
    %v984 = vunpack.c.h.b16 %v905
    %v985 = vunpack.c.l.b16 %v906
    %v986 = vunpack.c.h.b16 %v906
    %v987 = vunpack.c.l.b16 %v907
    %v988 = vunpack.c.h.b16 %v907
    %v989 = vunpack.c.l.b16 %v908
    %v990 = vunpack.c.h.b16 %v908
    %v991 = vunpack.c.l.b16 %v909
    %v992 = vunpack.c.h.b16 %v909
    %v993 = vunpack.c.l.b16 %v910
    %v994 = vunpack.c.h.b16 %v910
    %v995 = vunpack.c.l.b16 %v911
    %v996 = vunpack.c.h.b16 %v911
    %v997 = vunpack.c.l.b16 %v912
    %v998 = vunpack.c.h.b16 %v912
    %v999 = vunpack.c.l.b16 %v913
    %v1000 = vunpack.c.h.b16 %v913
    %v1001 = vunpack.c.l.b16 %v914
    %v1002 = vunpack.c.h.b16 %v914
    %v1003 = vunpack.c.l.b16 %v915
    %v1004 = vunpack.c.h.b16 %v915
    %v1005 = vunpack.c.l.b16 %v916
    %v1006 = vunpack.c.h.b16 %v916
    %v1007 = vunpack.c.l.b16 %v917
    %v1008 = vunpack.c.h.b16 %v917
    %v1009 = vunpack.c.l.b16 %v918
    %v1010 = vunpack.c.h.b16 %v918
    %v1011 = vunpack.c.l.b16 %v919
    %v1012 = vunpack.c.h.b16 %v919
    %v1013 = vunpack.c.l.b16 %v920
    %v1014 = vunpack.c.h.b16 %v920
    %v1015 = vunpack.c.l.b16 %v921
    %v1016 = vunpack.c.h.b16 %v921
    %v1017 = vunpack.c.l.b16 %v922
    %v1018 = vunpack.c.h.b16 %v922
    %v1019 = vunpack.c.l.b16 %v923
    %v1020 = vunpack.c.h.b16 %v923
    %v1021 = vunpack.c.l.b16 %v924
    %v1022 = vunpack.c.h.b16 %v924
    %v1023 = vunpack.c.l.b16 %v925
    %v1024 = vunpack.c.h.b16 %v925
    %v1025 = vunpack.c.l.b16 %v926
    %v1026 = vunpack.c.h.b16 %v926
    %v1027 = vunpack.c.l.b16 %v927
    %v1028 = vunpack.c.h.b16 %v927
    %v1029 = vunpack.c.l.b16 %v928
    %v1030 = vunpack.c.h.b16 %v928
    %v1031 = vunpack.c.l.b16 %v929
    %v1032 = vunpack.c.h.b16 %v929
    %v1033 = vunpack.c.l.b16 %v930
    %v1034 = vunpack.c.h.b16 %v930
    %v1035 = vunpack.c.l.b16 %v931
    %v1036 = vunpack.c.h.b16 %v931
    %v1037 = vunpack.c.l.b16 %v932
    %v1038 = vunpack.c.h.b16 %v932
    %v1039 = vunpack.c.l.b16 %v933
    %v1040 = vunpack.c.h.b16 %v933
    %v1041 = vunpack.c.l.b16 %v934
    %v1042 = vunpack.c.h.b16 %v934
    %v1043 = vpack.c.b16 %v981, %v979
    %v1044 = vpack.c.b16 %v982, %v980
    %v1045 = vpack.c.b16 %v985, %v983
    %v1046 = vpack.c.b16 %v986, %v984
    %v1047 = vpack.c.b16 %v989, %v987
    %v1048 = vpack.c.b16 %v990, %v988
    %v1049 = vpack.c.b16 %v993, %v991
    %v1050 = vpack.c.b16 %v994, %v992
    %v1051 = vpack.c.b16 %v997, %v995
    %v1052 = vpack.c.b16 %v998, %v996
    %v1053 = vpack.c.b16 %v1001, %v999
    %v1054 = vpack.c.b16 %v1002, %v1000
    %v1055 = vpack.c.b16 %v1005, %v1003
    %v1056 = vpack.c.b16 %v1006, %v1004
    %v1057 = vpack.c.b16 %v1009, %v1007
    %v1058 = vpack.c.b16 %v1010, %v1008
    %v1059 = vpack.c.b16 %v1013, %v1011
    %v1060 = vpack.c.b16 %v1014, %v1012
    %v1061 = vpack.c.b16 %v1017, %v1015
    %v1062 = vpack.c.b16 %v1018, %v1016
    %v1063 = vpack.c.b16 %v1021, %v1019
    %v1064 = vpack.c.b16 %v1022, %v1020
    %v1065 = vpack.c.b16 %v1025, %v1023
    %v1066 = vpack.c.b16 %v1026, %v1024
    %v1067 = vpack.c.b16 %v1029, %v1027
    %v1068 = vpack.c.b16 %v1030, %v1028
    %v1069 = vpack.c.b16 %v1033, %v1031
    %v1070 = vpack.c.b16 %v1034, %v1032
    %v1071 = vpack.c.b16 %v1037, %v1035
    %v1072 = vpack.c.b16 %v1038, %v1036
    %v1073 = vpack.c.b16 %v1041, %v1039
    %v1074 = vpack.c.b16 %v1042, %v1040
    %1107 = vmatprep.subr.bf16.mxu0 %v1044
    %1108 = vmatpush1.bf16.msra.mxu0 %v1043
    %1109 = vmatprep.subr.bf16.mxu0 %v1046
    %1110 = vmatpush1.bf16.msra.mxu0 %v1045
    %1111 = vmatprep.subr.bf16.mxu0 %v1048
    %1112 = vmatpush1.bf16.msra.mxu0 %v1047
    %1113 = vmatprep.subr.bf16.mxu0 %v1050
    %1114 = vmatpush1.bf16.msra.mxu0 %v1049
    %1115 = vmatprep.subr.bf16.mxu0 %v1052
    %1116 = vmatpush1.bf16.msra.mxu0 %v1051
    %1117 = vmatprep.subr.bf16.mxu0 %v1054
    %1118 = vmatpush1.bf16.msra.mxu0 %v1053
    %1119 = vmatprep.subr.bf16.mxu0 %v1056
    %1120 = vmatpush1.bf16.msra.mxu0 %v1055
    %1121 = vmatprep.subr.bf16.mxu0 %v1058
    %1122 = vmatpush1.bf16.msra.mxu0 %v1057
    %1123 = vmatprep.subr.bf16.mxu0 %v1060
    %1124 = vmatpush1.bf16.msra.mxu0 %v1059
    %1125 = vmatprep.subr.bf16.mxu0 %v1062
    %1126 = vmatpush1.bf16.msra.mxu0 %v1061
    %1127 = vmatprep.subr.bf16.mxu0 %v1064
    %1128 = vmatpush1.bf16.msra.mxu0 %v1063
    %1129 = vmatprep.subr.bf16.mxu0 %v1066
    %1130 = vmatpush1.bf16.msra.mxu0 %v1065
    %1131 = vmatprep.subr.bf16.mxu0 %v1068
    %1132 = vmatpush1.bf16.msra.mxu0 %v1067
    %1133 = vmatprep.subr.bf16.mxu0 %v1070
    %1134 = vmatpush1.bf16.msra.mxu0 %v1069
    %1135 = vmatprep.subr.bf16.mxu0 %v1072
    %1136 = vmatpush1.bf16.msra.mxu0 %v1071
    %1137 = vmatprep.subr.bf16.mxu0 %v1074
    %1138 = vmatpush1.bf16.msra.mxu0 %v1073
    %1139 = vmatprep.mubr.bf16.mxu0 %v902
    %1140 = vmatmul.mubr.bf16.gmra.mrb[0].mxu0 %v901
    %v1141 = vpop.f32.mrb[0].mxu0
    %v1142 = vadd.f32 %v940, %v1141
    %v1143 = vpop.f32.mrb[0].mxu0
    %v1144 = vadd.f32 %v944, %v1143
    %v1145 = vpop.f32.mrb[0].mxu0
    %v1146 = vpop.f32.mrb[0].mxu0
    %1147 = vdwg.mxu0
    %v1148 = vmax.f32 %v1142, 0.0
    %v1149 = vmax.f32 %v1144, 0.0
    %v1150 = vpack.c.bf16 %v1148, %v1148
    %v1151 = vpack.c.bf16 %v1149, %v1149
    %s1152 = scalar_lea.vmem [#allocation8], 256
    %v1153 = vld [vmem:[%s1152] sm:$0xff]
    %v1154 = vld [vmem:[%s1152 + $0x8] sm:$0xff]
    %v1155 = vld [vmem:[%s1152 + $0x10] sm:$0xff]
    %v1156 = vld [vmem:[%s1152 + $0x18] sm:$0xff]
    %v1157 = vld [vmem:[%s1152 + $0x20] sm:$0xff]
    %v1158 = vld [vmem:[%s1152 + $0x28] sm:$0xff]
    %v1159 = vld [vmem:[%s1152 + $0x30] sm:$0xff]
    %v1160 = vld [vmem:[%s1152 + $0x38] sm:$0xff]
    %v1161 = vld [vmem:[%s1152 + $0x40] sm:$0xff]
    %v1162 = vld [vmem:[%s1152 + $0x48] sm:$0xff]
    %v1163 = vld [vmem:[%s1152 + $0x50] sm:$0xff]
    %v1164 = vld [vmem:[%s1152 + $0x58] sm:$0xff]
    %v1165 = vld [vmem:[%s1152 + $0x60] sm:$0xff]
    %v1166 = vld [vmem:[%s1152 + $0x68] sm:$0xff]
    %v1167 = vld [vmem:[%s1152 + $0x70] sm:$0xff]
    %v1168 = vld [vmem:[%s1152 + $0x78] sm:$0xff]
    %v1169 = vld [vmem:[%s1152 + $0x80] sm:$0xff]
    %v1170 = vld [vmem:[%s1152 + $0x88] sm:$0xff]
    %v1171 = vld [vmem:[%s1152 + $0x90] sm:$0xff]
    %v1172 = vld [vmem:[%s1152 + $0x98] sm:$0xff]
    %v1173 = vld [vmem:[%s1152 + $0xa0] sm:$0xff]
    %v1174 = vld [vmem:[%s1152 + $0xa8] sm:$0xff]
    %v1175 = vld [vmem:[%s1152 + $0xb0] sm:$0xff]
    %v1176 = vld [vmem:[%s1152 + $0xb8] sm:$0xff]
    %v1177 = vld [vmem:[%s1152 + $0xc0] sm:$0xff]
    %v1178 = vld [vmem:[%s1152 + $0xc8] sm:$0xff]
    %v1179 = vld [vmem:[%s1152 + $0xd0] sm:$0xff]
    %v1180 = vld [vmem:[%s1152 + $0xd8] sm:$0xff]
    %v1181 = vld [vmem:[%s1152 + $0xe0] sm:$0xff]
    %v1182 = vld [vmem:[%s1152 + $0xe8] sm:$0xff]
    %v1183 = vld [vmem:[%s1152 + $0xf0] sm:$0xff]
    %v1184 = vld [vmem:[%s1152 + $0xf8] sm:$0xff]
    %s1185 = scalar_lea.vmem [#allocation10], 2
    %v1186 = vld [vmem:[%s1185] sm:$0x3]
    %v1188 = vlaneseq
    %v1189 = vshrl.u32 %v1188, 7
    %v1190 = vsub.s32 0, %v1189
    %v1191 = vrot.slane %v1186, %v1190
    %v1192 = vlaneseq
    %v1193 = vshrl.u32 %v1192, 7
    %v1194 = vsub.s32 1, %v1193
    %v1195 = vrot.slane %v1186, %v1194
    %v1230 = vunpack.c.l.b16 %v1153
    %v1231 = vunpack.c.h.b16 %v1153
    %v1232 = vunpack.c.l.b16 %v1154
    %v1233 = vunpack.c.h.b16 %v1154
    %v1234 = vunpack.c.l.b16 %v1155
    %v1235 = vunpack.c.h.b16 %v1155
    %v1236 = vunpack.c.l.b16 %v1156
    %v1237 = vunpack.c.h.b16 %v1156
    %v1238 = vunpack.c.l.b16 %v1157
    %v1239 = vunpack.c.h.b16 %v1157
    %v1240 = vunpack.c.l.b16 %v1158
    %v1241 = vunpack.c.h.b16 %v1158
    %v1242 = vunpack.c.l.b16 %v1159
    %v1243 = vunpack.c.h.b16 %v1159
    %v1244 = vunpack.c.l.b16 %v1160
    %v1245 = vunpack.c.h.b16 %v1160
    %v1246 = vunpack.c.l.b16 %v1161
    %v1247 = vunpack.c.h.b16 %v1161
    %v1248 = vunpack.c.l.b16 %v1162
    %v1249 = vunpack.c.h.b16 %v1162
    %v1250 = vunpack.c.l.b16 %v1163
    %v1251 = vunpack.c.h.b16 %v1163
    %v1252 = vunpack.c.l.b16 %v1164
    %v1253 = vunpack.c.h.b16 %v1164
    %v1254 = vunpack.c.l.b16 %v1165
    %v1255 = vunpack.c.h.b16 %v1165
    %v1256 = vunpack.c.l.b16 %v1166
    %v1257 = vunpack.c.h.b16 %v1166
    %v1258 = vunpack.c.l.b16 %v1167
    %v1259 = vunpack.c.h.b16 %v1167
    %v1260 = vunpack.c.l.b16 %v1168
    %v1261 = vunpack.c.h.b16 %v1168
    %v1262 = vunpack.c.l.b16 %v1169
    %v1263 = vunpack.c.h.b16 %v1169
    %v1264 = vunpack.c.l.b16 %v1170
    %v1265 = vunpack.c.h.b16 %v1170
    %v1266 = vunpack.c.l.b16 %v1171
    %v1267 = vunpack.c.h.b16 %v1171
    %v1268 = vunpack.c.l.b16 %v1172
    %v1269 = vunpack.c.h.b16 %v1172
    %v1270 = vunpack.c.l.b16 %v1173
    %v1271 = vunpack.c.h.b16 %v1173
    %v1272 = vunpack.c.l.b16 %v1174
    %v1273 = vunpack.c.h.b16 %v1174
    %v1274 = vunpack.c.l.b16 %v1175
    %v1275 = vunpack.c.h.b16 %v1175
    %v1276 = vunpack.c.l.b16 %v1176
    %v1277 = vunpack.c.h.b16 %v1176
    %v1278 = vunpack.c.l.b16 %v1177
    %v1279 = vunpack.c.h.b16 %v1177
    %v1280 = vunpack.c.l.b16 %v1178
    %v1281 = vunpack.c.h.b16 %v1178
    %v1282 = vunpack.c.l.b16 %v1179
    %v1283 = vunpack.c.h.b16 %v1179
    %v1284 = vunpack.c.l.b16 %v1180
    %v1285 = vunpack.c.h.b16 %v1180
    %v1286 = vunpack.c.l.b16 %v1181
    %v1287 = vunpack.c.h.b16 %v1181
    %v1288 = vunpack.c.l.b16 %v1182
    %v1289 = vunpack.c.h.b16 %v1182
    %v1290 = vunpack.c.l.b16 %v1183
    %v1291 = vunpack.c.h.b16 %v1183
    %v1292 = vunpack.c.l.b16 %v1184
    %v1293 = vunpack.c.h.b16 %v1184
    %v1294 = vpack.c.b16 %v1232, %v1230
    %v1295 = vpack.c.b16 %v1233, %v1231
    %v1296 = vpack.c.b16 %v1236, %v1234
    %v1297 = vpack.c.b16 %v1237, %v1235
    %v1298 = vpack.c.b16 %v1240, %v1238
    %v1299 = vpack.c.b16 %v1241, %v1239
    %v1300 = vpack.c.b16 %v1244, %v1242
    %v1301 = vpack.c.b16 %v1245, %v1243
    %v1302 = vpack.c.b16 %v1248, %v1246
    %v1303 = vpack.c.b16 %v1249, %v1247
    %v1304 = vpack.c.b16 %v1252, %v1250
    %v1305 = vpack.c.b16 %v1253, %v1251
    %v1306 = vpack.c.b16 %v1256, %v1254
    %v1307 = vpack.c.b16 %v1257, %v1255
    %v1308 = vpack.c.b16 %v1260, %v1258
    %v1309 = vpack.c.b16 %v1261, %v1259
    %v1310 = vpack.c.b16 %v1264, %v1262
    %v1311 = vpack.c.b16 %v1265, %v1263
    %v1312 = vpack.c.b16 %v1268, %v1266
    %v1313 = vpack.c.b16 %v1269, %v1267
    %v1314 = vpack.c.b16 %v1272, %v1270
    %v1315 = vpack.c.b16 %v1273, %v1271
    %v1316 = vpack.c.b16 %v1276, %v1274
    %v1317 = vpack.c.b16 %v1277, %v1275
    %v1318 = vpack.c.b16 %v1280, %v1278
    %v1319 = vpack.c.b16 %v1281, %v1279
    %v1320 = vpack.c.b16 %v1284, %v1282
    %v1321 = vpack.c.b16 %v1285, %v1283
    %v1322 = vpack.c.b16 %v1288, %v1286
    %v1323 = vpack.c.b16 %v1289, %v1287
    %v1324 = vpack.c.b16 %v1292, %v1290
    %v1325 = vpack.c.b16 %v1293, %v1291
    %1358 = vmatprep.subr.bf16.mxu0 %v1295
    %1359 = vmatpush1.bf16.msra.mxu0 %v1294
    %1360 = vmatprep.subr.bf16.mxu0 %v1297
    %1361 = vmatpush1.bf16.msra.mxu0 %v1296
    %1362 = vmatprep.subr.bf16.mxu0 %v1299
    %1363 = vmatpush1.bf16.msra.mxu0 %v1298
    %1364 = vmatprep.subr.bf16.mxu0 %v1301
    %1365 = vmatpush1.bf16.msra.mxu0 %v1300
    %1366 = vmatprep.subr.bf16.mxu0 %v1303
    %1367 = vmatpush1.bf16.msra.mxu0 %v1302
    %1368 = vmatprep.subr.bf16.mxu0 %v1305
    %1369 = vmatpush1.bf16.msra.mxu0 %v1304
    %1370 = vmatprep.subr.bf16.mxu0 %v1307
    %1371 = vmatpush1.bf16.msra.mxu0 %v1306
    %1372 = vmatprep.subr.bf16.mxu0 %v1309
    %1373 = vmatpush1.bf16.msra.mxu0 %v1308
    %1374 = vmatprep.subr.bf16.mxu0 %v1311
    %1375 = vmatpush1.bf16.msra.mxu0 %v1310
    %1376 = vmatprep.subr.bf16.mxu0 %v1313
    %1377 = vmatpush1.bf16.msra.mxu0 %v1312
    %1378 = vmatprep.subr.bf16.mxu0 %v1315
    %1379 = vmatpush1.bf16.msra.mxu0 %v1314
    %1380 = vmatprep.subr.bf16.mxu0 %v1317
    %1381 = vmatpush1.bf16.msra.mxu0 %v1316
    %1382 = vmatprep.subr.bf16.mxu0 %v1319
    %1383 = vmatpush1.bf16.msra.mxu0 %v1318
    %1384 = vmatprep.subr.bf16.mxu0 %v1321
    %1385 = vmatpush1.bf16.msra.mxu0 %v1320
    %1386 = vmatprep.subr.bf16.mxu0 %v1323
    %1387 = vmatpush1.bf16.msra.mxu0 %v1322
    %1388 = vmatprep.subr.bf16.mxu0 %v1325
    %1389 = vmatpush1.bf16.msra.mxu0 %v1324
    %1390 = vmatprep.mubr.bf16.mxu0 %v1151
    %1391 = vmatmul.mubr.bf16.gmra.mrb[0].mxu0 %v1150
    %v1392 = vpop.f32.mrb[0].mxu0
    %v1393 = vadd.f32 %v1191, %v1392
    %v1394 = vpop.f32.mrb[0].mxu0
    %v1395 = vadd.f32 %v1195, %v1394
    %v1396 = vpop.f32.mrb[0].mxu0
    %v1397 = vpop.f32.mrb[0].mxu0
    %1398 = vdwg.mxu0
    %v1399 = vmax.f32 %v1393, 0.0
    %v1400 = vmax.f32 %v1395, 0.0
    %v1401 = vpack.c.bf16 %v1399, %v1399
    %v1402 = vpack.c.bf16 %v1400, %v1400
    %s1403 = scalar_lea.vmem [#allocation8], 512
    %v1404 = vld [vmem:[%s1403] sm:$0xff]
    %v1405 = vld [vmem:[%s1403 + $0x8] sm:$0xff]
    %v1406 = vld [vmem:[%s1403 + $0x10] sm:$0xff]
    %v1407 = vld [vmem:[%s1403 + $0x18] sm:$0xff]
    %v1408 = vld [vmem:[%s1403 + $0x20] sm:$0xff]
    %v1409 = vld [vmem:[%s1403 + $0x28] sm:$0xff]
    %v1410 = vld [vmem:[%s1403 + $0x30] sm:$0xff]
    %v1411 = vld [vmem:[%s1403 + $0x38] sm:$0xff]
    %v1412 = vld [vmem:[%s1403 + $0x40] sm:$0xff]
    %v1413 = vld [vmem:[%s1403 + $0x48] sm:$0xff]
    %v1414 = vld [vmem:[%s1403 + $0x50] sm:$0xff]
    %v1415 = vld [vmem:[%s1403 + $0x58] sm:$0xff]
    %v1416 = vld [vmem:[%s1403 + $0x60] sm:$0xff]
    %v1417 = vld [vmem:[%s1403 + $0x68] sm:$0xff]
    %v1418 = vld [vmem:[%s1403 + $0x70] sm:$0xff]
    %v1419 = vld [vmem:[%s1403 + $0x78] sm:$0xff]
    %v1420 = vld [vmem:[%s1403 + $0x80] sm:$0xff]
    %v1421 = vld [vmem:[%s1403 + $0x88] sm:$0xff]
    %v1422 = vld [vmem:[%s1403 + $0x90] sm:$0xff]
    %v1423 = vld [vmem:[%s1403 + $0x98] sm:$0xff]
    %v1424 = vld [vmem:[%s1403 + $0xa0] sm:$0xff]
    %v1425 = vld [vmem:[%s1403 + $0xa8] sm:$0xff]
    %v1426 = vld [vmem:[%s1403 + $0xb0] sm:$0xff]
    %v1427 = vld [vmem:[%s1403 + $0xb8] sm:$0xff]
    %v1428 = vld [vmem:[%s1403 + $0xc0] sm:$0xff]
    %v1429 = vld [vmem:[%s1403 + $0xc8] sm:$0xff]
    %v1430 = vld [vmem:[%s1403 + $0xd0] sm:$0xff]
    %v1431 = vld [vmem:[%s1403 + $0xd8] sm:$0xff]
    %v1432 = vld [vmem:[%s1403 + $0xe0] sm:$0xff]
    %v1433 = vld [vmem:[%s1403 + $0xe8] sm:$0xff]
    %v1434 = vld [vmem:[%s1403 + $0xf0] sm:$0xff]
    %v1435 = vld [vmem:[%s1403 + $0xf8] sm:$0xff]
    %s1436 = scalar_lea.vmem [#allocation10], 4
    %v1437 = vld [vmem:[%s1436] sm:$0x3]
    %v1439 = vlaneseq
    %v1440 = vshrl.u32 %v1439, 7
    %v1441 = vsub.s32 0, %v1440
    %v1442 = vrot.slane %v1437, %v1441
    %v1443 = vlaneseq
    %v1444 = vshrl.u32 %v1443, 7
    %v1445 = vsub.s32 1, %v1444
    %v1446 = vrot.slane %v1437, %v1445
    %v1481 = vunpack.c.l.b16 %v1404
    %v1482 = vunpack.c.h.b16 %v1404
    %v1483 = vunpack.c.l.b16 %v1405
    %v1484 = vunpack.c.h.b16 %v1405
    %v1485 = vunpack.c.l.b16 %v1406
    %v1486 = vunpack.c.h.b16 %v1406
    %v1487 = vunpack.c.l.b16 %v1407
    %v1488 = vunpack.c.h.b16 %v1407
    %v1489 = vunpack.c.l.b16 %v1408
    %v1490 = vunpack.c.h.b16 %v1408
    %v1491 = vunpack.c.l.b16 %v1409
    %v1492 = vunpack.c.h.b16 %v1409
    %v1493 = vunpack.c.l.b16 %v1410
    %v1494 = vunpack.c.h.b16 %v1410
    %v1495 = vunpack.c.l.b16 %v1411
    %v1496 = vunpack.c.h.b16 %v1411
    %v1497 = vunpack.c.l.b16 %v1412
    %v1498 = vunpack.c.h.b16 %v1412
    %v1499 = vunpack.c.l.b16 %v1413
    %v1500 = vunpack.c.h.b16 %v1413
    %v1501 = vunpack.c.l.b16 %v1414
    %v1502 = vunpack.c.h.b16 %v1414
    %v1503 = vunpack.c.l.b16 %v1415
    %v1504 = vunpack.c.h.b16 %v1415
    %v1505 = vunpack.c.l.b16 %v1416
    %v1506 = vunpack.c.h.b16 %v1416
    %v1507 = vunpack.c.l.b16 %v1417
    %v1508 = vunpack.c.h.b16 %v1417
    %v1509 = vunpack.c.l.b16 %v1418
    %v1510 = vunpack.c.h.b16 %v1418
    %v1511 = vunpack.c.l.b16 %v1419
    %v1512 = vunpack.c.h.b16 %v1419
    %v1513 = vunpack.c.l.b16 %v1420
    %v1514 = vunpack.c.h.b16 %v1420
    %v1515 = vunpack.c.l.b16 %v1421
    %v1516 = vunpack.c.h.b16 %v1421
    %v1517 = vunpack.c.l.b16 %v1422
    %v1518 = vunpack.c.h.b16 %v1422
    %v1519 = vunpack.c.l.b16 %v1423
    %v1520 = vunpack.c.h.b16 %v1423
    %v1521 = vunpack.c.l.b16 %v1424
    %v1522 = vunpack.c.h.b16 %v1424
    %v1523 = vunpack.c.l.b16 %v1425
    %v1524 = vunpack.c.h.b16 %v1425
    %v1525 = vunpack.c.l.b16 %v1426
    %v1526 = vunpack.c.h.b16 %v1426
    %v1527 = vunpack.c.l.b16 %v1427
    %v1528 = vunpack.c.h.b16 %v1427
    %v1529 = vunpack.c.l.b16 %v1428
    %v1530 = vunpack.c.h.b16 %v1428
    %v1531 = vunpack.c.l.b16 %v1429
    %v1532 = vunpack.c.h.b16 %v1429
    %v1533 = vunpack.c.l.b16 %v1430
    %v1534 = vunpack.c.h.b16 %v1430
    %v1535 = vunpack.c.l.b16 %v1431
    %v1536 = vunpack.c.h.b16 %v1431
    %v1537 = vunpack.c.l.b16 %v1432
    %v1538 = vunpack.c.h.b16 %v1432
    %v1539 = vunpack.c.l.b16 %v1433
    %v1540 = vunpack.c.h.b16 %v1433
    %v1541 = vunpack.c.l.b16 %v1434
    %v1542 = vunpack.c.h.b16 %v1434
    %v1543 = vunpack.c.l.b16 %v1435
    %v1544 = vunpack.c.h.b16 %v1435
    %v1545 = vpack.c.b16 %v1483, %v1481
    %v1546 = vpack.c.b16 %v1484, %v1482
    %v1547 = vpack.c.b16 %v1487, %v1485
    %v1548 = vpack.c.b16 %v1488, %v1486
    %v1549 = vpack.c.b16 %v1491, %v1489
    %v1550 = vpack.c.b16 %v1492, %v1490
    %v1551 = vpack.c.b16 %v1495, %v1493
    %v1552 = vpack.c.b16 %v1496, %v1494
    %v1553 = vpack.c.b16 %v1499, %v1497
    %v1554 = vpack.c.b16 %v1500, %v1498
    %v1555 = vpack.c.b16 %v1503, %v1501
    %v1556 = vpack.c.b16 %v1504, %v1502
    %v1557 = vpack.c.b16 %v1507, %v1505
    %v1558 = vpack.c.b16 %v1508, %v1506
    %v1559 = vpack.c.b16 %v1511, %v1509
    %v1560 = vpack.c.b16 %v1512, %v1510
    %v1561 = vpack.c.b16 %v1515, %v1513
    %v1562 = vpack.c.b16 %v1516, %v1514
    %v1563 = vpack.c.b16 %v1519, %v1517
    %v1564 = vpack.c.b16 %v1520, %v1518
    %v1565 = vpack.c.b16 %v1523, %v1521
    %v1566 = vpack.c.b16 %v1524, %v1522
    %v1567 = vpack.c.b16 %v1527, %v1525
    %v1568 = vpack.c.b16 %v1528, %v1526
    %v1569 = vpack.c.b16 %v1531, %v1529
    %v1570 = vpack.c.b16 %v1532, %v1530
    %v1571 = vpack.c.b16 %v1535, %v1533
    %v1572 = vpack.c.b16 %v1536, %v1534
    %v1573 = vpack.c.b16 %v1539, %v1537
    %v1574 = vpack.c.b16 %v1540, %v1538
    %v1575 = vpack.c.b16 %v1543, %v1541
    %v1576 = vpack.c.b16 %v1544, %v1542
    %1609 = vmatprep.subr.bf16.mxu0 %v1546
    %1610 = vmatpush1.bf16.msra.mxu0 %v1545
    %1611 = vmatprep.subr.bf16.mxu0 %v1548
    %1612 = vmatpush1.bf16.msra.mxu0 %v1547
    %1613 = vmatprep.subr.bf16.mxu0 %v1550
    %1614 = vmatpush1.bf16.msra.mxu0 %v1549
    %1615 = vmatprep.subr.bf16.mxu0 %v1552
    %1616 = vmatpush1.bf16.msra.mxu0 %v1551
    %1617 = vmatprep.subr.bf16.mxu0 %v1554
    %1618 = vmatpush1.bf16.msra.mxu0 %v1553
    %1619 = vmatprep.subr.bf16.mxu0 %v1556
    %1620 = vmatpush1.bf16.msra.mxu0 %v1555
    %1621 = vmatprep.subr.bf16.mxu0 %v1558
    %1622 = vmatpush1.bf16.msra.mxu0 %v1557
    %1623 = vmatprep.subr.bf16.mxu0 %v1560
    %1624 = vmatpush1.bf16.msra.mxu0 %v1559
    %1625 = vmatprep.subr.bf16.mxu0 %v1562
    %1626 = vmatpush1.bf16.msra.mxu0 %v1561
    %1627 = vmatprep.subr.bf16.mxu0 %v1564
    %1628 = vmatpush1.bf16.msra.mxu0 %v1563
    %1629 = vmatprep.subr.bf16.mxu0 %v1566
    %1630 = vmatpush1.bf16.msra.mxu0 %v1565
    %1631 = vmatprep.subr.bf16.mxu0 %v1568
    %1632 = vmatpush1.bf16.msra.mxu0 %v1567
    %1633 = vmatprep.subr.bf16.mxu0 %v1570
    %1634 = vmatpush1.bf16.msra.mxu0 %v1569
    %1635 = vmatprep.subr.bf16.mxu0 %v1572
    %1636 = vmatpush1.bf16.msra.mxu0 %v1571
    %1637 = vmatprep.subr.bf16.mxu0 %v1574
    %1638 = vmatpush1.bf16.msra.mxu0 %v1573
    %1639 = vmatprep.subr.bf16.mxu0 %v1576
    %1640 = vmatpush1.bf16.msra.mxu0 %v1575
    %1641 = vmatprep.mubr.bf16.mxu0 %v1402
    %1642 = vmatmul.mubr.bf16.gmra.mrb[0].mxu0 %v1401
    %v1643 = vpop.f32.mrb[0].mxu0
    %v1644 = vadd.f32 %v1442, %v1643
    %v1645 = vpop.f32.mrb[0].mxu0
    %v1646 = vadd.f32 %v1446, %v1645
    %v1647 = vpop.f32.mrb[0].mxu0
    %v1648 = vpop.f32.mrb[0].mxu0
    %1649 = vdwg.mxu0
    %v1650 = vmax.f32 %v1644, 0.0
    %v1651 = vmax.f32 %v1646, 0.0
    %v1652 = vpack.c.bf16 %v1650, %v1650
    %v1653 = vpack.c.bf16 %v1651, %v1651
    %s1654 = scalar_lea.vmem [#allocation8], 768
    %v1655 = vld [vmem:[%s1654] sm:$0xff]
    %v1656 = vld [vmem:[%s1654 + $0x8] sm:$0xff]
    %v1657 = vld [vmem:[%s1654 + $0x10] sm:$0xff]
    %v1658 = vld [vmem:[%s1654 + $0x18] sm:$0xff]
    %v1659 = vld [vmem:[%s1654 + $0x20] sm:$0xff]
    %v1660 = vld [vmem:[%s1654 + $0x28] sm:$0xff]
    %v1661 = vld [vmem:[%s1654 + $0x30] sm:$0xff]
    %v1662 = vld [vmem:[%s1654 + $0x38] sm:$0xff]
    %v1663 = vld [vmem:[%s1654 + $0x40] sm:$0xff]
    %v1664 = vld [vmem:[%s1654 + $0x48] sm:$0xff]
    %v1665 = vld [vmem:[%s1654 + $0x50] sm:$0xff]
    %v1666 = vld [vmem:[%s1654 + $0x58] sm:$0xff]
    %v1667 = vld [vmem:[%s1654 + $0x60] sm:$0xff]
    %v1668 = vld [vmem:[%s1654 + $0x68] sm:$0xff]
    %v1669 = vld [vmem:[%s1654 + $0x70] sm:$0xff]
    %v1670 = vld [vmem:[%s1654 + $0x78] sm:$0xff]
    %v1671 = vld [vmem:[%s1654 + $0x80] sm:$0xff]
    %v1672 = vld [vmem:[%s1654 + $0x88] sm:$0xff]
    %v1673 = vld [vmem:[%s1654 + $0x90] sm:$0xff]
    %v1674 = vld [vmem:[%s1654 + $0x98] sm:$0xff]
    %v1675 = vld [vmem:[%s1654 + $0xa0] sm:$0xff]
    %v1676 = vld [vmem:[%s1654 + $0xa8] sm:$0xff]
    %v1677 = vld [vmem:[%s1654 + $0xb0] sm:$0xff]
    %v1678 = vld [vmem:[%s1654 + $0xb8] sm:$0xff]
    %v1679 = vld [vmem:[%s1654 + $0xc0] sm:$0xff]
    %v1680 = vld [vmem:[%s1654 + $0xc8] sm:$0xff]
    %v1681 = vld [vmem:[%s1654 + $0xd0] sm:$0xff]
    %v1682 = vld [vmem:[%s1654 + $0xd8] sm:$0xff]
    %v1683 = vld [vmem:[%s1654 + $0xe0] sm:$0xff]
    %v1684 = vld [vmem:[%s1654 + $0xe8] sm:$0xff]
    %v1685 = vld [vmem:[%s1654 + $0xf0] sm:$0xff]
    %v1686 = vld [vmem:[%s1654 + $0xf8] sm:$0xff]
    %s1687 = scalar_lea.vmem [#allocation10], 6
    %v1688 = vld [vmem:[%s1687] sm:$0x3]
    %v1690 = vlaneseq
    %v1691 = vshrl.u32 %v1690, 7
    %v1692 = vsub.s32 0, %v1691
    %v1693 = vrot.slane %v1688, %v1692
    %v1694 = vlaneseq
    %v1695 = vshrl.u32 %v1694, 7
    %v1696 = vsub.s32 1, %v1695
    %v1697 = vrot.slane %v1688, %v1696
    %v1732 = vunpack.c.l.b16 %v1655
    %v1733 = vunpack.c.h.b16 %v1655
    %v1734 = vunpack.c.l.b16 %v1656
    %v1735 = vunpack.c.h.b16 %v1656
    %v1736 = vunpack.c.l.b16 %v1657
    %v1737 = vunpack.c.h.b16 %v1657
    %v1738 = vunpack.c.l.b16 %v1658
    %v1739 = vunpack.c.h.b16 %v1658
    %v1740 = vunpack.c.l.b16 %v1659
    %v1741 = vunpack.c.h.b16 %v1659
    %v1742 = vunpack.c.l.b16 %v1660
    %v1743 = vunpack.c.h.b16 %v1660
    %v1744 = vunpack.c.l.b16 %v1661
    %v1745 = vunpack.c.h.b16 %v1661
    %v1746 = vunpack.c.l.b16 %v1662
    %v1747 = vunpack.c.h.b16 %v1662
    %v1748 = vunpack.c.l.b16 %v1663
    %v1749 = vunpack.c.h.b16 %v1663
    %v1750 = vunpack.c.l.b16 %v1664
    %v1751 = vunpack.c.h.b16 %v1664
    %v1752 = vunpack.c.l.b16 %v1665
    %v1753 = vunpack.c.h.b16 %v1665
    %v1754 = vunpack.c.l.b16 %v1666
    %v1755 = vunpack.c.h.b16 %v1666
    %v1756 = vunpack.c.l.b16 %v1667
    %v1757 = vunpack.c.h.b16 %v1667
    %v1758 = vunpack.c.l.b16 %v1668
    %v1759 = vunpack.c.h.b16 %v1668
    %v1760 = vunpack.c.l.b16 %v1669
    %v1761 = vunpack.c.h.b16 %v1669
    %v1762 = vunpack.c.l.b16 %v1670
    %v1763 = vunpack.c.h.b16 %v1670
    %v1764 = vunpack.c.l.b16 %v1671
    %v1765 = vunpack.c.h.b16 %v1671
    %v1766 = vunpack.c.l.b16 %v1672
    %v1767 = vunpack.c.h.b16 %v1672
    %v1768 = vunpack.c.l.b16 %v1673
    %v1769 = vunpack.c.h.b16 %v1673
    %v1770 = vunpack.c.l.b16 %v1674
    %v1771 = vunpack.c.h.b16 %v1674
    %v1772 = vunpack.c.l.b16 %v1675
    %v1773 = vunpack.c.h.b16 %v1675
    %v1774 = vunpack.c.l.b16 %v1676
    %v1775 = vunpack.c.h.b16 %v1676
    %v1776 = vunpack.c.l.b16 %v1677
    %v1777 = vunpack.c.h.b16 %v1677
    %v1778 = vunpack.c.l.b16 %v1678
    %v1779 = vunpack.c.h.b16 %v1678
    %v1780 = vunpack.c.l.b16 %v1679
    %v1781 = vunpack.c.h.b16 %v1679
    %v1782 = vunpack.c.l.b16 %v1680
    %v1783 = vunpack.c.h.b16 %v1680
    %v1784 = vunpack.c.l.b16 %v1681
    %v1785 = vunpack.c.h.b16 %v1681
    %v1786 = vunpack.c.l.b16 %v1682
    %v1787 = vunpack.c.h.b16 %v1682
    %v1788 = vunpack.c.l.b16 %v1683
    %v1789 = vunpack.c.h.b16 %v1683
    %v1790 = vunpack.c.l.b16 %v1684
    %v1791 = vunpack.c.h.b16 %v1684
    %v1792 = vunpack.c.l.b16 %v1685
    %v1793 = vunpack.c.h.b16 %v1685
    %v1794 = vunpack.c.l.b16 %v1686
    %v1795 = vunpack.c.h.b16 %v1686
    %v1796 = vpack.c.b16 %v1734, %v1732
    %v1797 = vpack.c.b16 %v1735, %v1733
    %v1798 = vpack.c.b16 %v1738, %v1736
    %v1799 = vpack.c.b16 %v1739, %v1737
    %v1800 = vpack.c.b16 %v1742, %v1740
    %v1801 = vpack.c.b16 %v1743, %v1741
    %v1802 = vpack.c.b16 %v1746, %v1744
    %v1803 = vpack.c.b16 %v1747, %v1745
    %v1804 = vpack.c.b16 %v1750, %v1748
    %v1805 = vpack.c.b16 %v1751, %v1749
    %v1806 = vpack.c.b16 %v1754, %v1752
    %v1807 = vpack.c.b16 %v1755, %v1753
    %v1808 = vpack.c.b16 %v1758, %v1756
    %v1809 = vpack.c.b16 %v1759, %v1757
    %v1810 = vpack.c.b16 %v1762, %v1760
    %v1811 = vpack.c.b16 %v1763, %v1761
    %v1812 = vpack.c.b16 %v1766, %v1764
    %v1813 = vpack.c.b16 %v1767, %v1765
    %v1814 = vpack.c.b16 %v1770, %v1768
    %v1815 = vpack.c.b16 %v1771, %v1769
    %v1816 = vpack.c.b16 %v1774, %v1772
    %v1817 = vpack.c.b16 %v1775, %v1773
    %v1818 = vpack.c.b16 %v1778, %v1776
    %v1819 = vpack.c.b16 %v1779, %v1777
    %v1820 = vpack.c.b16 %v1782, %v1780
    %v1821 = vpack.c.b16 %v1783, %v1781
    %v1822 = vpack.c.b16 %v1786, %v1784
    %v1823 = vpack.c.b16 %v1787, %v1785
    %v1824 = vpack.c.b16 %v1790, %v1788
    %v1825 = vpack.c.b16 %v1791, %v1789
    %v1826 = vpack.c.b16 %v1794, %v1792
    %v1827 = vpack.c.b16 %v1795, %v1793
    %1860 = vmatprep.subr.bf16.mxu0 %v1797
    %1861 = vmatpush1.bf16.msra.mxu0 %v1796
    %1862 = vmatprep.subr.bf16.mxu0 %v1799
    %1863 = vmatpush1.bf16.msra.mxu0 %v1798
    %1864 = vmatprep.subr.bf16.mxu0 %v1801
    %1865 = vmatpush1.bf16.msra.mxu0 %v1800
    %1866 = vmatprep.subr.bf16.mxu0 %v1803
    %1867 = vmatpush1.bf16.msra.mxu0 %v1802
    %1868 = vmatprep.subr.bf16.mxu0 %v1805
    %1869 = vmatpush1.bf16.msra.mxu0 %v1804
    %1870 = vmatprep.subr.bf16.mxu0 %v1807
    %1871 = vmatpush1.bf16.msra.mxu0 %v1806
    %1872 = vmatprep.subr.bf16.mxu0 %v1809
    %1873 = vmatpush1.bf16.msra.mxu0 %v1808
    %1874 = vmatprep.subr.bf16.mxu0 %v1811
    %1875 = vmatpush1.bf16.msra.mxu0 %v1810
    %1876 = vmatprep.subr.bf16.mxu0 %v1813
    %1877 = vmatpush1.bf16.msra.mxu0 %v1812
    %1878 = vmatprep.subr.bf16.mxu0 %v1815
    %1879 = vmatpush1.bf16.msra.mxu0 %v1814
    %1880 = vmatprep.subr.bf16.mxu0 %v1817
    %1881 = vmatpush1.bf16.msra.mxu0 %v1816
    %1882 = vmatprep.subr.bf16.mxu0 %v1819
    %1883 = vmatpush1.bf16.msra.mxu0 %v1818
    %1884 = vmatprep.subr.bf16.mxu0 %v1821
    %1885 = vmatpush1.bf16.msra.mxu0 %v1820
    %1886 = vmatprep.subr.bf16.mxu0 %v1823
    %1887 = vmatpush1.bf16.msra.mxu0 %v1822
    %1888 = vmatprep.subr.bf16.mxu0 %v1825
    %1889 = vmatpush1.bf16.msra.mxu0 %v1824
    %1890 = vmatprep.subr.bf16.mxu0 %v1827
    %1891 = vmatpush1.bf16.msra.mxu0 %v1826
    %1892 = vmatprep.mubr.bf16.mxu0 %v1653
    %1893 = vmatmul.mubr.bf16.gmra.mrb[0].mxu0 %v1652
    %v1894 = vpop.f32.mrb[0].mxu0
    %v1895 = vadd.f32 %v1693, %v1894
    %v1896 = vpop.f32.mrb[0].mxu0
    %v1897 = vadd.f32 %v1697, %v1896
    %v1898 = vpop.f32.mrb[0].mxu0
    %v1899 = vpop.f32.mrb[0].mxu0
    %1900 = vdwg.mxu0
    %v1901 = vmax.f32 %v1895, 0.0
    %v1902 = vmax.f32 %v1897, 0.0
    %v1903 = vpack.c.bf16 %v1901, %v1901
    %v1904 = vpack.c.bf16 %v1902, %v1902
    %s1905 = scalar_lea.vmem [#allocation8], 1024
    %v1906 = vld [vmem:[%s1905] sm:$0xff]
    %v1907 = vld [vmem:[%s1905 + $0x8] sm:$0xff]
    %v1908 = vld [vmem:[%s1905 + $0x10] sm:$0xff]
    %v1909 = vld [vmem:[%s1905 + $0x18] sm:$0xff]
    %v1910 = vld [vmem:[%s1905 + $0x20] sm:$0xff]
    %v1911 = vld [vmem:[%s1905 + $0x28] sm:$0xff]
    %v1912 = vld [vmem:[%s1905 + $0x30] sm:$0xff]
    %v1913 = vld [vmem:[%s1905 + $0x38] sm:$0xff]
    %v1914 = vld [vmem:[%s1905 + $0x40] sm:$0xff]
    %v1915 = vld [vmem:[%s1905 + $0x48] sm:$0xff]
    %v1916 = vld [vmem:[%s1905 + $0x50] sm:$0xff]
    %v1917 = vld [vmem:[%s1905 + $0x58] sm:$0xff]
    %v1918 = vld [vmem:[%s1905 + $0x60] sm:$0xff]
    %v1919 = vld [vmem:[%s1905 + $0x68] sm:$0xff]
    %v1920 = vld [vmem:[%s1905 + $0x70] sm:$0xff]
    %v1921 = vld [vmem:[%s1905 + $0x78] sm:$0xff]
    %v1922 = vld [vmem:[%s1905 + $0x80] sm:$0xff]
    %v1923 = vld [vmem:[%s1905 + $0x88] sm:$0xff]
    %v1924 = vld [vmem:[%s1905 + $0x90] sm:$0xff]
    %v1925 = vld [vmem:[%s1905 + $0x98] sm:$0xff]
    %v1926 = vld [vmem:[%s1905 + $0xa0] sm:$0xff]
    %v1927 = vld [vmem:[%s1905 + $0xa8] sm:$0xff]
    %v1928 = vld [vmem:[%s1905 + $0xb0] sm:$0xff]
    %v1929 = vld [vmem:[%s1905 + $0xb8] sm:$0xff]
    %v1930 = vld [vmem:[%s1905 + $0xc0] sm:$0xff]
    %v1931 = vld [vmem:[%s1905 + $0xc8] sm:$0xff]
    %v1932 = vld [vmem:[%s1905 + $0xd0] sm:$0xff]
    %v1933 = vld [vmem:[%s1905 + $0xd8] sm:$0xff]
    %v1934 = vld [vmem:[%s1905 + $0xe0] sm:$0xff]
    %v1935 = vld [vmem:[%s1905 + $0xe8] sm:$0xff]
    %v1936 = vld [vmem:[%s1905 + $0xf0] sm:$0xff]
    %v1937 = vld [vmem:[%s1905 + $0xf8] sm:$0xff]
    %s1938 = scalar_lea.vmem [#allocation10], 8
    %v1939 = vld [vmem:[%s1938] sm:$0x3]
    %v1941 = vlaneseq
    %v1942 = vshrl.u32 %v1941, 7
    %v1943 = vsub.s32 0, %v1942
    %v1944 = vrot.slane %v1939, %v1943
    %v1945 = vlaneseq
    %v1946 = vshrl.u32 %v1945, 7
    %v1947 = vsub.s32 1, %v1946
    %v1948 = vrot.slane %v1939, %v1947
    %v1983 = vunpack.c.l.b16 %v1906
    %v1984 = vunpack.c.h.b16 %v1906
    %v1985 = vunpack.c.l.b16 %v1907
    %v1986 = vunpack.c.h.b16 %v1907
    %v1987 = vunpack.c.l.b16 %v1908
    %v1988 = vunpack.c.h.b16 %v1908
    %v1989 = vunpack.c.l.b16 %v1909
    %v1990 = vunpack.c.h.b16 %v1909
    %v1991 = vunpack.c.l.b16 %v1910
    %v1992 = vunpack.c.h.b16 %v1910
    %v1993 = vunpack.c.l.b16 %v1911
    %v1994 = vunpack.c.h.b16 %v1911
    %v1995 = vunpack.c.l.b16 %v1912
    %v1996 = vunpack.c.h.b16 %v1912
    %v1997 = vunpack.c.l.b16 %v1913
    %v1998 = vunpack.c.h.b16 %v1913
    %v1999 = vunpack.c.l.b16 %v1914
    %v2000 = vunpack.c.h.b16 %v1914
    %v2001 = vunpack.c.l.b16 %v1915
    %v2002 = vunpack.c.h.b16 %v1915
    %v2003 = vunpack.c.l.b16 %v1916
    %v2004 = vunpack.c.h.b16 %v1916
    %v2005 = vunpack.c.l.b16 %v1917
    %v2006 = vunpack.c.h.b16 %v1917
    %v2007 = vunpack.c.l.b16 %v1918
    %v2008 = vunpack.c.h.b16 %v1918
    %v2009 = vunpack.c.l.b16 %v1919
    %v2010 = vunpack.c.h.b16 %v1919
    %v2011 = vunpack.c.l.b16 %v1920
    %v2012 = vunpack.c.h.b16 %v1920
    %v2013 = vunpack.c.l.b16 %v1921
    %v2014 = vunpack.c.h.b16 %v1921
    %v2015 = vunpack.c.l.b16 %v1922
    %v2016 = vunpack.c.h.b16 %v1922
    %v2017 = vunpack.c.l.b16 %v1923
    %v2018 = vunpack.c.h.b16 %v1923
    %v2019 = vunpack.c.l.b16 %v1924
    %v2020 = vunpack.c.h.b16 %v1924
    %v2021 = vunpack.c.l.b16 %v1925
    %v2022 = vunpack.c.h.b16 %v1925
    %v2023 = vunpack.c.l.b16 %v1926
    %v2024 = vunpack.c.h.b16 %v1926
    %v2025 = vunpack.c.l.b16 %v1927
    %v2026 = vunpack.c.h.b16 %v1927
    %v2027 = vunpack.c.l.b16 %v1928
    %v2028 = vunpack.c.h.b16 %v1928
    %v2029 = vunpack.c.l.b16 %v1929
    %v2030 = vunpack.c.h.b16 %v1929
    %v2031 = vunpack.c.l.b16 %v1930
    %v2032 = vunpack.c.h.b16 %v1930
    %v2033 = vunpack.c.l.b16 %v1931
    %v2034 = vunpack.c.h.b16 %v1931
    %v2035 = vunpack.c.l.b16 %v1932
    %v2036 = vunpack.c.h.b16 %v1932
    %v2037 = vunpack.c.l.b16 %v1933
    %v2038 = vunpack.c.h.b16 %v1933
    %v2039 = vunpack.c.l.b16 %v1934
    %v2040 = vunpack.c.h.b16 %v1934
    %v2041 = vunpack.c.l.b16 %v1935
    %v2042 = vunpack.c.h.b16 %v1935
    %v2043 = vunpack.c.l.b16 %v1936
    %v2044 = vunpack.c.h.b16 %v1936
    %v2045 = vunpack.c.l.b16 %v1937
    %v2046 = vunpack.c.h.b16 %v1937
    %v2047 = vpack.c.b16 %v1985, %v1983
    %v2048 = vpack.c.b16 %v1986, %v1984
    %v2049 = vpack.c.b16 %v1989, %v1987
    %v2050 = vpack.c.b16 %v1990, %v1988
    %v2051 = vpack.c.b16 %v1993, %v1991
    %v2052 = vpack.c.b16 %v1994, %v1992
    %v2053 = vpack.c.b16 %v1997, %v1995
    %v2054 = vpack.c.b16 %v1998, %v1996
    %v2055 = vpack.c.b16 %v2001, %v1999
    %v2056 = vpack.c.b16 %v2002, %v2000
    %v2057 = vpack.c.b16 %v2005, %v2003
    %v2058 = vpack.c.b16 %v2006, %v2004
    %v2059 = vpack.c.b16 %v2009, %v2007
    %v2060 = vpack.c.b16 %v2010, %v2008
    %v2061 = vpack.c.b16 %v2013, %v2011
    %v2062 = vpack.c.b16 %v2014, %v2012
    %v2063 = vpack.c.b16 %v2017, %v2015
    %v2064 = vpack.c.b16 %v2018, %v2016
    %v2065 = vpack.c.b16 %v2021, %v2019
    %v2066 = vpack.c.b16 %v2022, %v2020
    %v2067 = vpack.c.b16 %v2025, %v2023
    %v2068 = vpack.c.b16 %v2026, %v2024
    %v2069 = vpack.c.b16 %v2029, %v2027
    %v2070 = vpack.c.b16 %v2030, %v2028
    %v2071 = vpack.c.b16 %v2033, %v2031
    %v2072 = vpack.c.b16 %v2034, %v2032
    %v2073 = vpack.c.b16 %v2037, %v2035
    %v2074 = vpack.c.b16 %v2038, %v2036
    %v2075 = vpack.c.b16 %v2041, %v2039
    %v2076 = vpack.c.b16 %v2042, %v2040
    %v2077 = vpack.c.b16 %v2045, %v2043
    %v2078 = vpack.c.b16 %v2046, %v2044
    %2111 = vmatprep.subr.bf16.mxu0 %v2048
    %2112 = vmatpush1.bf16.msra.mxu0 %v2047
    %2113 = vmatprep.subr.bf16.mxu0 %v2050
    %2114 = vmatpush1.bf16.msra.mxu0 %v2049
    %2115 = vmatprep.subr.bf16.mxu0 %v2052
    %2116 = vmatpush1.bf16.msra.mxu0 %v2051
    %2117 = vmatprep.subr.bf16.mxu0 %v2054
    %2118 = vmatpush1.bf16.msra.mxu0 %v2053
    %2119 = vmatprep.subr.bf16.mxu0 %v2056
    %2120 = vmatpush1.bf16.msra.mxu0 %v2055
    %2121 = vmatprep.subr.bf16.mxu0 %v2058
    %2122 = vmatpush1.bf16.msra.mxu0 %v2057
    %2123 = vmatprep.subr.bf16.mxu0 %v2060
    %2124 = vmatpush1.bf16.msra.mxu0 %v2059
    %2125 = vmatprep.subr.bf16.mxu0 %v2062
    %2126 = vmatpush1.bf16.msra.mxu0 %v2061
    %2127 = vmatprep.subr.bf16.mxu0 %v2064
    %2128 = vmatpush1.bf16.msra.mxu0 %v2063
    %2129 = vmatprep.subr.bf16.mxu0 %v2066
    %2130 = vmatpush1.bf16.msra.mxu0 %v2065
    %2131 = vmatprep.subr.bf16.mxu0 %v2068
    %2132 = vmatpush1.bf16.msra.mxu0 %v2067
    %2133 = vmatprep.subr.bf16.mxu0 %v2070
    %2134 = vmatpush1.bf16.msra.mxu0 %v2069
    %2135 = vmatprep.subr.bf16.mxu0 %v2072
    %2136 = vmatpush1.bf16.msra.mxu0 %v2071
    %2137 = vmatprep.subr.bf16.mxu0 %v2074
    %2138 = vmatpush1.bf16.msra.mxu0 %v2073
    %2139 = vmatprep.subr.bf16.mxu0 %v2076
    %2140 = vmatpush1.bf16.msra.mxu0 %v2075
    %2141 = vmatprep.subr.bf16.mxu0 %v2078
    %2142 = vmatpush1.bf16.msra.mxu0 %v2077
    %2143 = vmatprep.mubr.bf16.mxu0 %v1904
    %2144 = vmatmul.mubr.bf16.gmra.mrb[0].mxu0 %v1903
    %v2145 = vpop.f32.mrb[0].mxu0
    %v2146 = vadd.f32 %v1944, %v2145
    %v2147 = vpop.f32.mrb[0].mxu0
    %v2148 = vadd.f32 %v1948, %v2147
    %v2149 = vpop.f32.mrb[0].mxu0
    %v2150 = vpop.f32.mrb[0].mxu0
    %2151 = vdwg.mxu0
    %v2152 = vmax.f32 %v2146, 0.0
    %v2153 = vmax.f32 %v2148, 0.0
    %v2154 = vpack.c.bf16 %v2152, %v2152
    %v2155 = vpack.c.bf16 %v2153, %v2153
    %s2156 = scalar_lea.vmem [#allocation8], 1280
    %v2157 = vld [vmem:[%s2156] sm:$0xff]
    %v2158 = vld [vmem:[%s2156 + $0x8] sm:$0xff]
    %v2159 = vld [vmem:[%s2156 + $0x10] sm:$0xff]
    %v2160 = vld [vmem:[%s2156 + $0x18] sm:$0xff]
    %v2161 = vld [vmem:[%s2156 + $0x20] sm:$0xff]
    %v2162 = vld [vmem:[%s2156 + $0x28] sm:$0xff]
    %v2163 = vld [vmem:[%s2156 + $0x30] sm:$0xff]
    %v2164 = vld [vmem:[%s2156 + $0x38] sm:$0xff]
    %v2165 = vld [vmem:[%s2156 + $0x40] sm:$0xff]
    %v2166 = vld [vmem:[%s2156 + $0x48] sm:$0xff]
    %v2167 = vld [vmem:[%s2156 + $0x50] sm:$0xff]
    %v2168 = vld [vmem:[%s2156 + $0x58] sm:$0xff]
    %v2169 = vld [vmem:[%s2156 + $0x60] sm:$0xff]
    %v2170 = vld [vmem:[%s2156 + $0x68] sm:$0xff]
    %v2171 = vld [vmem:[%s2156 + $0x70] sm:$0xff]
    %v2172 = vld [vmem:[%s2156 + $0x78] sm:$0xff]
    %v2173 = vld [vmem:[%s2156 + $0x80] sm:$0xff]
    %v2174 = vld [vmem:[%s2156 + $0x88] sm:$0xff]
    %v2175 = vld [vmem:[%s2156 + $0x90] sm:$0xff]
    %v2176 = vld [vmem:[%s2156 + $0x98] sm:$0xff]
    %v2177 = vld [vmem:[%s2156 + $0xa0] sm:$0xff]
    %v2178 = vld [vmem:[%s2156 + $0xa8] sm:$0xff]
    %v2179 = vld [vmem:[%s2156 + $0xb0] sm:$0xff]
    %v2180 = vld [vmem:[%s2156 + $0xb8] sm:$0xff]
    %v2181 = vld [vmem:[%s2156 + $0xc0] sm:$0xff]
    %v2182 = vld [vmem:[%s2156 + $0xc8] sm:$0xff]
    %v2183 = vld [vmem:[%s2156 + $0xd0] sm:$0xff]
    %v2184 = vld [vmem:[%s2156 + $0xd8] sm:$0xff]
    %v2185 = vld [vmem:[%s2156 + $0xe0] sm:$0xff]
    %v2186 = vld [vmem:[%s2156 + $0xe8] sm:$0xff]
    %v2187 = vld [vmem:[%s2156 + $0xf0] sm:$0xff]
    %v2188 = vld [vmem:[%s2156 + $0xf8] sm:$0xff]
    %s2189 = scalar_lea.vmem [#allocation10], 10
    %v2190 = vld [vmem:[%s2189] sm:$0x3]
    %v2192 = vlaneseq
    %v2193 = vshrl.u32 %v2192, 7
    %v2194 = vsub.s32 0, %v2193
    %v2195 = vrot.slane %v2190, %v2194
    %v2196 = vlaneseq
    %v2197 = vshrl.u32 %v2196, 7
    %v2198 = vsub.s32 1, %v2197
    %v2199 = vrot.slane %v2190, %v2198
    %v2234 = vunpack.c.l.b16 %v2157
    %v2235 = vunpack.c.h.b16 %v2157
    %v2236 = vunpack.c.l.b16 %v2158
    %v2237 = vunpack.c.h.b16 %v2158
    %v2238 = vunpack.c.l.b16 %v2159
    %v2239 = vunpack.c.h.b16 %v2159
    %v2240 = vunpack.c.l.b16 %v2160
    %v2241 = vunpack.c.h.b16 %v2160
    %v2242 = vunpack.c.l.b16 %v2161
    %v2243 = vunpack.c.h.b16 %v2161
    %v2244 = vunpack.c.l.b16 %v2162
    %v2245 = vunpack.c.h.b16 %v2162
    %v2246 = vunpack.c.l.b16 %v2163
    %v2247 = vunpack.c.h.b16 %v2163
    %v2248 = vunpack.c.l.b16 %v2164
    %v2249 = vunpack.c.h.b16 %v2164
    %v2250 = vunpack.c.l.b16 %v2165
    %v2251 = vunpack.c.h.b16 %v2165
    %v2252 = vunpack.c.l.b16 %v2166
    %v2253 = vunpack.c.h.b16 %v2166
    %v2254 = vunpack.c.l.b16 %v2167
    %v2255 = vunpack.c.h.b16 %v2167
    %v2256 = vunpack.c.l.b16 %v2168
    %v2257 = vunpack.c.h.b16 %v2168
    %v2258 = vunpack.c.l.b16 %v2169
    %v2259 = vunpack.c.h.b16 %v2169
    %v2260 = vunpack.c.l.b16 %v2170
    %v2261 = vunpack.c.h.b16 %v2170
    %v2262 = vunpack.c.l.b16 %v2171
    %v2263 = vunpack.c.h.b16 %v2171
    %v2264 = vunpack.c.l.b16 %v2172
    %v2265 = vunpack.c.h.b16 %v2172
    %v2266 = vunpack.c.l.b16 %v2173
    %v2267 = vunpack.c.h.b16 %v2173
    %v2268 = vunpack.c.l.b16 %v2174
    %v2269 = vunpack.c.h.b16 %v2174
    %v2270 = vunpack.c.l.b16 %v2175
    %v2271 = vunpack.c.h.b16 %v2175
    %v2272 = vunpack.c.l.b16 %v2176
    %v2273 = vunpack.c.h.b16 %v2176
    %v2274 = vunpack.c.l.b16 %v2177
    %v2275 = vunpack.c.h.b16 %v2177
    %v2276 = vunpack.c.l.b16 %v2178
    %v2277 = vunpack.c.h.b16 %v2178
    %v2278 = vunpack.c.l.b16 %v2179
    %v2279 = vunpack.c.h.b16 %v2179
    %v2280 = vunpack.c.l.b16 %v2180
    %v2281 = vunpack.c.h.b16 %v2180
    %v2282 = vunpack.c.l.b16 %v2181
    %v2283 = vunpack.c.h.b16 %v2181
    %v2284 = vunpack.c.l.b16 %v2182
    %v2285 = vunpack.c.h.b16 %v2182
    %v2286 = vunpack.c.l.b16 %v2183
    %v2287 = vunpack.c.h.b16 %v2183
    %v2288 = vunpack.c.l.b16 %v2184
    %v2289 = vunpack.c.h.b16 %v2184
    %v2290 = vunpack.c.l.b16 %v2185
    %v2291 = vunpack.c.h.b16 %v2185
    %v2292 = vunpack.c.l.b16 %v2186
    %v2293 = vunpack.c.h.b16 %v2186
    %v2294 = vunpack.c.l.b16 %v2187
    %v2295 = vunpack.c.h.b16 %v2187
    %v2296 = vunpack.c.l.b16 %v2188
    %v2297 = vunpack.c.h.b16 %v2188
    %v2298 = vpack.c.b16 %v2236, %v2234
    %v2299 = vpack.c.b16 %v2237, %v2235
    %v2300 = vpack.c.b16 %v2240, %v2238
    %v2301 = vpack.c.b16 %v2241, %v2239
    %v2302 = vpack.c.b16 %v2244, %v2242
    %v2303 = vpack.c.b16 %v2245, %v2243
    %v2304 = vpack.c.b16 %v2248, %v2246
    %v2305 = vpack.c.b16 %v2249, %v2247
    %v2306 = vpack.c.b16 %v2252, %v2250
    %v2307 = vpack.c.b16 %v2253, %v2251
    %v2308 = vpack.c.b16 %v2256, %v2254
    %v2309 = vpack.c.b16 %v2257, %v2255
    %v2310 = vpack.c.b16 %v2260, %v2258
    %v2311 = vpack.c.b16 %v2261, %v2259
    %v2312 = vpack.c.b16 %v2264, %v2262
    %v2313 = vpack.c.b16 %v2265, %v2263
    %v2314 = vpack.c.b16 %v2268, %v2266
    %v2315 = vpack.c.b16 %v2269, %v2267
    %v2316 = vpack.c.b16 %v2272, %v2270
    %v2317 = vpack.c.b16 %v2273, %v2271
    %v2318 = vpack.c.b16 %v2276, %v2274
    %v2319 = vpack.c.b16 %v2277, %v2275
    %v2320 = vpack.c.b16 %v2280, %v2278
    %v2321 = vpack.c.b16 %v2281, %v2279
    %v2322 = vpack.c.b16 %v2284, %v2282
    %v2323 = vpack.c.b16 %v2285, %v2283
    %v2324 = vpack.c.b16 %v2288, %v2286
    %v2325 = vpack.c.b16 %v2289, %v2287
    %v2326 = vpack.c.b16 %v2292, %v2290
    %v2327 = vpack.c.b16 %v2293, %v2291
    %v2328 = vpack.c.b16 %v2296, %v2294
    %v2329 = vpack.c.b16 %v2297, %v2295
    %2362 = vmatprep.subr.bf16.mxu0 %v2299
    %2363 = vmatpush1.bf16.msra.mxu0 %v2298
    %2364 = vmatprep.subr.bf16.mxu0 %v2301
    %2365 = vmatpush1.bf16.msra.mxu0 %v2300
    %2366 = vmatprep.subr.bf16.mxu0 %v2303
    %2367 = vmatpush1.bf16.msra.mxu0 %v2302
    %2368 = vmatprep.subr.bf16.mxu0 %v2305
    %2369 = vmatpush1.bf16.msra.mxu0 %v2304
    %2370 = vmatprep.subr.bf16.mxu0 %v2307
    %2371 = vmatpush1.bf16.msra.mxu0 %v2306
    %2372 = vmatprep.subr.bf16.mxu0 %v2309
    %2373 = vmatpush1.bf16.msra.mxu0 %v2308
    %2374 = vmatprep.subr.bf16.mxu0 %v2311
    %2375 = vmatpush1.bf16.msra.mxu0 %v2310
    %2376 = vmatprep.subr.bf16.mxu0 %v2313
    %2377 = vmatpush1.bf16.msra.mxu0 %v2312
    %2378 = vmatprep.subr.bf16.mxu0 %v2315
    %2379 = vmatpush1.bf16.msra.mxu0 %v2314
    %2380 = vmatprep.subr.bf16.mxu0 %v2317
    %2381 = vmatpush1.bf16.msra.mxu0 %v2316
    %2382 = vmatprep.subr.bf16.mxu0 %v2319
    %2383 = vmatpush1.bf16.msra.mxu0 %v2318
    %2384 = vmatprep.subr.bf16.mxu0 %v2321
    %2385 = vmatpush1.bf16.msra.mxu0 %v2320
    %2386 = vmatprep.subr.bf16.mxu0 %v2323
    %2387 = vmatpush1.bf16.msra.mxu0 %v2322
    %2388 = vmatprep.subr.bf16.mxu0 %v2325
    %2389 = vmatpush1.bf16.msra.mxu0 %v2324
    %2390 = vmatprep.subr.bf16.mxu0 %v2327
    %2391 = vmatpush1.bf16.msra.mxu0 %v2326
    %2392 = vmatprep.subr.bf16.mxu0 %v2329
    %2393 = vmatpush1.bf16.msra.mxu0 %v2328
    %2394 = vmatprep.mubr.bf16.mxu0 %v2155
    %2395 = vmatmul.mubr.bf16.gmra.mrb[0].mxu0 %v2154
    %v2396 = vpop.f32.mrb[0].mxu0
    %v2397 = vadd.f32 %v2195, %v2396
    %v2398 = vpop.f32.mrb[0].mxu0
    %v2399 = vadd.f32 %v2199, %v2398
    %v2400 = vpop.f32.mrb[0].mxu0
    %v2401 = vpop.f32.mrb[0].mxu0
    %2402 = vdwg.mxu0
    %v2403 = vmax.f32 %v2397, 0.0
    %v2404 = vmax.f32 %v2399, 0.0
    %v2405 = vpack.c.bf16 %v2403, %v2403
    %v2406 = vpack.c.bf16 %v2404, %v2404
    %s2407 = scalar_lea.vmem [#allocation8], 1536
    %v2408 = vld [vmem:[%s2407] sm:$0xff]
    %v2409 = vld [vmem:[%s2407 + $0x8] sm:$0xff]
    %v2410 = vld [vmem:[%s2407 + $0x10] sm:$0xff]
    %v2411 = vld [vmem:[%s2407 + $0x18] sm:$0xff]
    %v2412 = vld [vmem:[%s2407 + $0x20] sm:$0xff]
    %v2413 = vld [vmem:[%s2407 + $0x28] sm:$0xff]
    %v2414 = vld [vmem:[%s2407 + $0x30] sm:$0xff]
    %v2415 = vld [vmem:[%s2407 + $0x38] sm:$0xff]
    %v2416 = vld [vmem:[%s2407 + $0x40] sm:$0xff]
    %v2417 = vld [vmem:[%s2407 + $0x48] sm:$0xff]
    %v2418 = vld [vmem:[%s2407 + $0x50] sm:$0xff]
    %v2419 = vld [vmem:[%s2407 + $0x58] sm:$0xff]
    %v2420 = vld [vmem:[%s2407 + $0x60] sm:$0xff]
    %v2421 = vld [vmem:[%s2407 + $0x68] sm:$0xff]
    %v2422 = vld [vmem:[%s2407 + $0x70] sm:$0xff]
    %v2423 = vld [vmem:[%s2407 + $0x78] sm:$0xff]
    %v2424 = vld [vmem:[%s2407 + $0x80] sm:$0xff]
    %v2425 = vld [vmem:[%s2407 + $0x88] sm:$0xff]
    %v2426 = vld [vmem:[%s2407 + $0x90] sm:$0xff]
    %v2427 = vld [vmem:[%s2407 + $0x98] sm:$0xff]
    %v2428 = vld [vmem:[%s2407 + $0xa0] sm:$0xff]
    %v2429 = vld [vmem:[%s2407 + $0xa8] sm:$0xff]
    %v2430 = vld [vmem:[%s2407 + $0xb0] sm:$0xff]
    %v2431 = vld [vmem:[%s2407 + $0xb8] sm:$0xff]
    %v2432 = vld [vmem:[%s2407 + $0xc0] sm:$0xff]
    %v2433 = vld [vmem:[%s2407 + $0xc8] sm:$0xff]
    %v2434 = vld [vmem:[%s2407 + $0xd0] sm:$0xff]
    %v2435 = vld [vmem:[%s2407 + $0xd8] sm:$0xff]
    %v2436 = vld [vmem:[%s2407 + $0xe0] sm:$0xff]
    %v2437 = vld [vmem:[%s2407 + $0xe8] sm:$0xff]
    %v2438 = vld [vmem:[%s2407 + $0xf0] sm:$0xff]
    %v2439 = vld [vmem:[%s2407 + $0xf8] sm:$0xff]
    %s2440 = scalar_lea.vmem [#allocation10], 12
    %v2441 = vld [vmem:[%s2440] sm:$0x3]
    %v2443 = vlaneseq
    %v2444 = vshrl.u32 %v2443, 7
    %v2445 = vsub.s32 0, %v2444
    %v2446 = vrot.slane %v2441, %v2445
    %v2447 = vlaneseq
    %v2448 = vshrl.u32 %v2447, 7
    %v2449 = vsub.s32 1, %v2448
    %v2450 = vrot.slane %v2441, %v2449
    %v2485 = vunpack.c.l.b16 %v2408
    %v2486 = vunpack.c.h.b16 %v2408
    %v2487 = vunpack.c.l.b16 %v2409
    %v2488 = vunpack.c.h.b16 %v2409
    %v2489 = vunpack.c.l.b16 %v2410
    %v2490 = vunpack.c.h.b16 %v2410
    %v2491 = vunpack.c.l.b16 %v2411
    %v2492 = vunpack.c.h.b16 %v2411
    %v2493 = vunpack.c.l.b16 %v2412
    %v2494 = vunpack.c.h.b16 %v2412
    %v2495 = vunpack.c.l.b16 %v2413
    %v2496 = vunpack.c.h.b16 %v2413
    %v2497 = vunpack.c.l.b16 %v2414
    %v2498 = vunpack.c.h.b16 %v2414
    %v2499 = vunpack.c.l.b16 %v2415
    %v2500 = vunpack.c.h.b16 %v2415
    %v2501 = vunpack.c.l.b16 %v2416
    %v2502 = vunpack.c.h.b16 %v2416
    %v2503 = vunpack.c.l.b16 %v2417
    %v2504 = vunpack.c.h.b16 %v2417
    %v2505 = vunpack.c.l.b16 %v2418
    %v2506 = vunpack.c.h.b16 %v2418
    %v2507 = vunpack.c.l.b16 %v2419
    %v2508 = vunpack.c.h.b16 %v2419
    %v2509 = vunpack.c.l.b16 %v2420
    %v2510 = vunpack.c.h.b16 %v2420
    %v2511 = vunpack.c.l.b16 %v2421
    %v2512 = vunpack.c.h.b16 %v2421
    %v2513 = vunpack.c.l.b16 %v2422
    %v2514 = vunpack.c.h.b16 %v2422
    %v2515 = vunpack.c.l.b16 %v2423
    %v2516 = vunpack.c.h.b16 %v2423
    %v2517 = vunpack.c.l.b16 %v2424
    %v2518 = vunpack.c.h.b16 %v2424
    %v2519 = vunpack.c.l.b16 %v2425
    %v2520 = vunpack.c.h.b16 %v2425
    %v2521 = vunpack.c.l.b16 %v2426
    %v2522 = vunpack.c.h.b16 %v2426
    %v2523 = vunpack.c.l.b16 %v2427
    %v2524 = vunpack.c.h.b16 %v2427
    %v2525 = vunpack.c.l.b16 %v2428
    %v2526 = vunpack.c.h.b16 %v2428
    %v2527 = vunpack.c.l.b16 %v2429
    %v2528 = vunpack.c.h.b16 %v2429
    %v2529 = vunpack.c.l.b16 %v2430
    %v2530 = vunpack.c.h.b16 %v2430
    %v2531 = vunpack.c.l.b16 %v2431
    %v2532 = vunpack.c.h.b16 %v2431
    %v2533 = vunpack.c.l.b16 %v2432
    %v2534 = vunpack.c.h.b16 %v2432
    %v2535 = vunpack.c.l.b16 %v2433
    %v2536 = vunpack.c.h.b16 %v2433
    %v2537 = vunpack.c.l.b16 %v2434
    %v2538 = vunpack.c.h.b16 %v2434
    %v2539 = vunpack.c.l.b16 %v2435
    %v2540 = vunpack.c.h.b16 %v2435
    %v2541 = vunpack.c.l.b16 %v2436
    %v2542 = vunpack.c.h.b16 %v2436
    %v2543 = vunpack.c.l.b16 %v2437
    %v2544 = vunpack.c.h.b16 %v2437
    %v2545 = vunpack.c.l.b16 %v2438
    %v2546 = vunpack.c.h.b16 %v2438
    %v2547 = vunpack.c.l.b16 %v2439
    %v2548 = vunpack.c.h.b16 %v2439
    %v2549 = vpack.c.b16 %v2487, %v2485
    %v2550 = vpack.c.b16 %v2488, %v2486
    %v2551 = vpack.c.b16 %v2491, %v2489
    %v2552 = vpack.c.b16 %v2492, %v2490
    %v2553 = vpack.c.b16 %v2495, %v2493
    %v2554 = vpack.c.b16 %v2496, %v2494
    %v2555 = vpack.c.b16 %v2499, %v2497
    %v2556 = vpack.c.b16 %v2500, %v2498
    %v2557 = vpack.c.b16 %v2503, %v2501
    %v2558 = vpack.c.b16 %v2504, %v2502
    %v2559 = vpack.c.b16 %v2507, %v2505
    %v2560 = vpack.c.b16 %v2508, %v2506
    %v2561 = vpack.c.b16 %v2511, %v2509
    %v2562 = vpack.c.b16 %v2512, %v2510
    %v2563 = vpack.c.b16 %v2515, %v2513
    %v2564 = vpack.c.b16 %v2516, %v2514
    %v2565 = vpack.c.b16 %v2519, %v2517
    %v2566 = vpack.c.b16 %v2520, %v2518
    %v2567 = vpack.c.b16 %v2523, %v2521
    %v2568 = vpack.c.b16 %v2524, %v2522
    %v2569 = vpack.c.b16 %v2527, %v2525
    %v2570 = vpack.c.b16 %v2528, %v2526
    %v2571 = vpack.c.b16 %v2531, %v2529
    %v2572 = vpack.c.b16 %v2532, %v2530
    %v2573 = vpack.c.b16 %v2535, %v2533
    %v2574 = vpack.c.b16 %v2536, %v2534
    %v2575 = vpack.c.b16 %v2539, %v2537
    %v2576 = vpack.c.b16 %v2540, %v2538
    %v2577 = vpack.c.b16 %v2543, %v2541
    %v2578 = vpack.c.b16 %v2544, %v2542
    %v2579 = vpack.c.b16 %v2547, %v2545
    %v2580 = vpack.c.b16 %v2548, %v2546
    %2613 = vmatprep.subr.bf16.mxu0 %v2550
    %2614 = vmatpush1.bf16.msra.mxu0 %v2549
    %2615 = vmatprep.subr.bf16.mxu0 %v2552
    %2616 = vmatpush1.bf16.msra.mxu0 %v2551
    %2617 = vmatprep.subr.bf16.mxu0 %v2554
    %2618 = vmatpush1.bf16.msra.mxu0 %v2553
    %2619 = vmatprep.subr.bf16.mxu0 %v2556
    %2620 = vmatpush1.bf16.msra.mxu0 %v2555
    %2621 = vmatprep.subr.bf16.mxu0 %v2558
    %2622 = vmatpush1.bf16.msra.mxu0 %v2557
    %2623 = vmatprep.subr.bf16.mxu0 %v2560
    %2624 = vmatpush1.bf16.msra.mxu0 %v2559
    %2625 = vmatprep.subr.bf16.mxu0 %v2562
    %2626 = vmatpush1.bf16.msra.mxu0 %v2561
    %2627 = vmatprep.subr.bf16.mxu0 %v2564
    %2628 = vmatpush1.bf16.msra.mxu0 %v2563
    %2629 = vmatprep.subr.bf16.mxu0 %v2566
    %2630 = vmatpush1.bf16.msra.mxu0 %v2565
    %2631 = vmatprep.subr.bf16.mxu0 %v2568
    %2632 = vmatpush1.bf16.msra.mxu0 %v2567
    %2633 = vmatprep.subr.bf16.mxu0 %v2570
    %2634 = vmatpush1.bf16.msra.mxu0 %v2569
    %2635 = vmatprep.subr.bf16.mxu0 %v2572
    %2636 = vmatpush1.bf16.msra.mxu0 %v2571
    %2637 = vmatprep.subr.bf16.mxu0 %v2574
    %2638 = vmatpush1.bf16.msra.mxu0 %v2573
    %2639 = vmatprep.subr.bf16.mxu0 %v2576
    %2640 = vmatpush1.bf16.msra.mxu0 %v2575
    %2641 = vmatprep.subr.bf16.mxu0 %v2578
    %2642 = vmatpush1.bf16.msra.mxu0 %v2577
    %2643 = vmatprep.subr.bf16.mxu0 %v2580
    %2644 = vmatpush1.bf16.msra.mxu0 %v2579
    %2645 = vmatprep.mubr.bf16.mxu0 %v2406
    %2646 = vmatmul.mubr.bf16.gmra.mrb[0].mxu0 %v2405
    %v2647 = vpop.f32.mrb[0].mxu0
    %v2648 = vadd.f32 %v2446, %v2647
    %v2649 = vpop.f32.mrb[0].mxu0
    %v2650 = vadd.f32 %v2450, %v2649
    %v2651 = vpop.f32.mrb[0].mxu0
    %v2652 = vpop.f32.mrb[0].mxu0
    %2653 = vdwg.mxu0
    %v2654 = vmax.f32 %v2648, 0.0
    %v2655 = vmax.f32 %v2650, 0.0
    %v2656 = vpack.c.bf16 %v2654, %v2654
    %v2657 = vpack.c.bf16 %v2655, %v2655
    %s2658 = scalar_lea.vmem [#allocation8], 1792
    %v2659 = vld [vmem:[%s2658] sm:$0xff]
    %v2660 = vld [vmem:[%s2658 + $0x8] sm:$0xff]
    %v2661 = vld [vmem:[%s2658 + $0x10] sm:$0xff]
    %v2662 = vld [vmem:[%s2658 + $0x18] sm:$0xff]
    %v2663 = vld [vmem:[%s2658 + $0x20] sm:$0xff]
    %v2664 = vld [vmem:[%s2658 + $0x28] sm:$0xff]
    %v2665 = vld [vmem:[%s2658 + $0x30] sm:$0xff]
    %v2666 = vld [vmem:[%s2658 + $0x38] sm:$0xff]
    %v2667 = vld [vmem:[%s2658 + $0x40] sm:$0xff]
    %v2668 = vld [vmem:[%s2658 + $0x48] sm:$0xff]
    %v2669 = vld [vmem:[%s2658 + $0x50] sm:$0xff]
    %v2670 = vld [vmem:[%s2658 + $0x58] sm:$0xff]
    %v2671 = vld [vmem:[%s2658 + $0x60] sm:$0xff]
    %v2672 = vld [vmem:[%s2658 + $0x68] sm:$0xff]
    %v2673 = vld [vmem:[%s2658 + $0x70] sm:$0xff]
    %v2674 = vld [vmem:[%s2658 + $0x78] sm:$0xff]
    %v2675 = vld [vmem:[%s2658 + $0x80] sm:$0xff]
    %v2676 = vld [vmem:[%s2658 + $0x88] sm:$0xff]
    %v2677 = vld [vmem:[%s2658 + $0x90] sm:$0xff]
    %v2678 = vld [vmem:[%s2658 + $0x98] sm:$0xff]
    %v2679 = vld [vmem:[%s2658 + $0xa0] sm:$0xff]
    %v2680 = vld [vmem:[%s2658 + $0xa8] sm:$0xff]
    %v2681 = vld [vmem:[%s2658 + $0xb0] sm:$0xff]
    %v2682 = vld [vmem:[%s2658 + $0xb8] sm:$0xff]
    %v2683 = vld [vmem:[%s2658 + $0xc0] sm:$0xff]
    %v2684 = vld [vmem:[%s2658 + $0xc8] sm:$0xff]
    %v2685 = vld [vmem:[%s2658 + $0xd0] sm:$0xff]
    %v2686 = vld [vmem:[%s2658 + $0xd8] sm:$0xff]
    %v2687 = vld [vmem:[%s2658 + $0xe0] sm:$0xff]
    %v2688 = vld [vmem:[%s2658 + $0xe8] sm:$0xff]
    %v2689 = vld [vmem:[%s2658 + $0xf0] sm:$0xff]
    %v2690 = vld [vmem:[%s2658 + $0xf8] sm:$0xff]
    %s2691 = scalar_lea.vmem [#allocation10], 14
    %v2692 = vld [vmem:[%s2691] sm:$0x3]
    %v2694 = vlaneseq
    %v2695 = vshrl.u32 %v2694, 7
    %v2696 = vsub.s32 0, %v2695
    %v2697 = vrot.slane %v2692, %v2696
    %v2698 = vlaneseq
    %v2699 = vshrl.u32 %v2698, 7
    %v2700 = vsub.s32 1, %v2699
    %v2701 = vrot.slane %v2692, %v2700
    %v2736 = vunpack.c.l.b16 %v2659
    %v2737 = vunpack.c.h.b16 %v2659
    %v2738 = vunpack.c.l.b16 %v2660
    %v2739 = vunpack.c.h.b16 %v2660
    %v2740 = vunpack.c.l.b16 %v2661
    %v2741 = vunpack.c.h.b16 %v2661
    %v2742 = vunpack.c.l.b16 %v2662
    %v2743 = vunpack.c.h.b16 %v2662
    %v2744 = vunpack.c.l.b16 %v2663
    %v2745 = vunpack.c.h.b16 %v2663
    %v2746 = vunpack.c.l.b16 %v2664
    %v2747 = vunpack.c.h.b16 %v2664
    %v2748 = vunpack.c.l.b16 %v2665
    %v2749 = vunpack.c.h.b16 %v2665
    %v2750 = vunpack.c.l.b16 %v2666
    %v2751 = vunpack.c.h.b16 %v2666
    %v2752 = vunpack.c.l.b16 %v2667
    %v2753 = vunpack.c.h.b16 %v2667
    %v2754 = vunpack.c.l.b16 %v2668
    %v2755 = vunpack.c.h.b16 %v2668
    %v2756 = vunpack.c.l.b16 %v2669
    %v2757 = vunpack.c.h.b16 %v2669
    %v2758 = vunpack.c.l.b16 %v2670
    %v2759 = vunpack.c.h.b16 %v2670
    %v2760 = vunpack.c.l.b16 %v2671
    %v2761 = vunpack.c.h.b16 %v2671
    %v2762 = vunpack.c.l.b16 %v2672
    %v2763 = vunpack.c.h.b16 %v2672
    %v2764 = vunpack.c.l.b16 %v2673
    %v2765 = vunpack.c.h.b16 %v2673
    %v2766 = vunpack.c.l.b16 %v2674
    %v2767 = vunpack.c.h.b16 %v2674
    %v2768 = vunpack.c.l.b16 %v2675
    %v2769 = vunpack.c.h.b16 %v2675
    %v2770 = vunpack.c.l.b16 %v2676
    %v2771 = vunpack.c.h.b16 %v2676
    %v2772 = vunpack.c.l.b16 %v2677
    %v2773 = vunpack.c.h.b16 %v2677
    %v2774 = vunpack.c.l.b16 %v2678
    %v2775 = vunpack.c.h.b16 %v2678
    %v2776 = vunpack.c.l.b16 %v2679
    %v2777 = vunpack.c.h.b16 %v2679
    %v2778 = vunpack.c.l.b16 %v2680
    %v2779 = vunpack.c.h.b16 %v2680
    %v2780 = vunpack.c.l.b16 %v2681
    %v2781 = vunpack.c.h.b16 %v2681
    %v2782 = vunpack.c.l.b16 %v2682
    %v2783 = vunpack.c.h.b16 %v2682
    %v2784 = vunpack.c.l.b16 %v2683
    %v2785 = vunpack.c.h.b16 %v2683
    %v2786 = vunpack.c.l.b16 %v2684
    %v2787 = vunpack.c.h.b16 %v2684
    %v2788 = vunpack.c.l.b16 %v2685
    %v2789 = vunpack.c.h.b16 %v2685
    %v2790 = vunpack.c.l.b16 %v2686
    %v2791 = vunpack.c.h.b16 %v2686
    %v2792 = vunpack.c.l.b16 %v2687
    %v2793 = vunpack.c.h.b16 %v2687
    %v2794 = vunpack.c.l.b16 %v2688
    %v2795 = vunpack.c.h.b16 %v2688
    %v2796 = vunpack.c.l.b16 %v2689
    %v2797 = vunpack.c.h.b16 %v2689
    %v2798 = vunpack.c.l.b16 %v2690
    %v2799 = vunpack.c.h.b16 %v2690
    %v2800 = vpack.c.b16 %v2738, %v2736
    %v2801 = vpack.c.b16 %v2739, %v2737
    %v2802 = vpack.c.b16 %v2742, %v2740
    %v2803 = vpack.c.b16 %v2743, %v2741
    %v2804 = vpack.c.b16 %v2746, %v2744
    %v2805 = vpack.c.b16 %v2747, %v2745
    %v2806 = vpack.c.b16 %v2750, %v2748
    %v2807 = vpack.c.b16 %v2751, %v2749
    %v2808 = vpack.c.b16 %v2754, %v2752
    %v2809 = vpack.c.b16 %v2755, %v2753
    %v2810 = vpack.c.b16 %v2758, %v2756
    %v2811 = vpack.c.b16 %v2759, %v2757
    %v2812 = vpack.c.b16 %v2762, %v2760
    %v2813 = vpack.c.b16 %v2763, %v2761
    %v2814 = vpack.c.b16 %v2766, %v2764
    %v2815 = vpack.c.b16 %v2767, %v2765
    %v2816 = vpack.c.b16 %v2770, %v2768
    %v2817 = vpack.c.b16 %v2771, %v2769
    %v2818 = vpack.c.b16 %v2774, %v2772
    %v2819 = vpack.c.b16 %v2775, %v2773
    %v2820 = vpack.c.b16 %v2778, %v2776
    %v2821 = vpack.c.b16 %v2779, %v2777
    %v2822 = vpack.c.b16 %v2782, %v2780
    %v2823 = vpack.c.b16 %v2783, %v2781
    %v2824 = vpack.c.b16 %v2786, %v2784
    %v2825 = vpack.c.b16 %v2787, %v2785
    %v2826 = vpack.c.b16 %v2790, %v2788
    %v2827 = vpack.c.b16 %v2791, %v2789
    %v2828 = vpack.c.b16 %v2794, %v2792
    %v2829 = vpack.c.b16 %v2795, %v2793
    %v2830 = vpack.c.b16 %v2798, %v2796
    %v2831 = vpack.c.b16 %v2799, %v2797
    %2864 = vmatprep.subr.bf16.mxu0 %v2801
    %2865 = vmatpush1.bf16.msra.mxu0 %v2800
    %2866 = vmatprep.subr.bf16.mxu0 %v2803
    %2867 = vmatpush1.bf16.msra.mxu0 %v2802
    %2868 = vmatprep.subr.bf16.mxu0 %v2805
    %2869 = vmatpush1.bf16.msra.mxu0 %v2804
    %2870 = vmatprep.subr.bf16.mxu0 %v2807
    %2871 = vmatpush1.bf16.msra.mxu0 %v2806
    %2872 = vmatprep.subr.bf16.mxu0 %v2809
    %2873 = vmatpush1.bf16.msra.mxu0 %v2808
    %2874 = vmatprep.subr.bf16.mxu0 %v2811
    %2875 = vmatpush1.bf16.msra.mxu0 %v2810
    %2876 = vmatprep.subr.bf16.mxu0 %v2813
    %2877 = vmatpush1.bf16.msra.mxu0 %v2812
    %2878 = vmatprep.subr.bf16.mxu0 %v2815
    %2879 = vmatpush1.bf16.msra.mxu0 %v2814
    %2880 = vmatprep.subr.bf16.mxu0 %v2817
    %2881 = vmatpush1.bf16.msra.mxu0 %v2816
    %2882 = vmatprep.subr.bf16.mxu0 %v2819
    %2883 = vmatpush1.bf16.msra.mxu0 %v2818
    %2884 = vmatprep.subr.bf16.mxu0 %v2821
    %2885 = vmatpush1.bf16.msra.mxu0 %v2820
    %2886 = vmatprep.subr.bf16.mxu0 %v2823
    %2887 = vmatpush1.bf16.msra.mxu0 %v2822
    %2888 = vmatprep.subr.bf16.mxu0 %v2825
    %2889 = vmatpush1.bf16.msra.mxu0 %v2824
    %2890 = vmatprep.subr.bf16.mxu0 %v2827
    %2891 = vmatpush1.bf16.msra.mxu0 %v2826
    %2892 = vmatprep.subr.bf16.mxu0 %v2829
    %2893 = vmatpush1.bf16.msra.mxu0 %v2828
    %2894 = vmatprep.subr.bf16.mxu0 %v2831
    %2895 = vmatpush1.bf16.msra.mxu0 %v2830
    %2896 = vmatprep.mubr.bf16.mxu0 %v2657
    %2897 = vmatmul.mubr.bf16.gmra.mrb[0].mxu0 %v2656
    %v2898 = vpop.f32.mrb[0].mxu0
    %v2899 = vadd.f32 %v2697, %v2898
    %v2900 = vpop.f32.mrb[0].mxu0
    %v2901 = vadd.f32 %v2701, %v2900
    %v2902 = vpop.f32.mrb[0].mxu0
    %v2903 = vpop.f32.mrb[0].mxu0
    %2904 = vdwg.mxu0
    %v2905 = vmax.f32 %v2899, 0.0
    %v2906 = vmax.f32 %v2901, 0.0
    %v2907 = vpack.c.bf16 %v2905, %v2905
    %v2908 = vpack.c.bf16 %v2906, %v2906
    %s2909 = scalar_lea.vmem [#allocation8], 2048
    %v2910 = vld [vmem:[%s2909] sm:$0xff]
    %v2911 = vld [vmem:[%s2909 + $0x8] sm:$0xff]
    %v2912 = vld [vmem:[%s2909 + $0x10] sm:$0xff]
    %v2913 = vld [vmem:[%s2909 + $0x18] sm:$0xff]
    %v2914 = vld [vmem:[%s2909 + $0x20] sm:$0xff]
    %v2915 = vld [vmem:[%s2909 + $0x28] sm:$0xff]
    %v2916 = vld [vmem:[%s2909 + $0x30] sm:$0xff]
    %v2917 = vld [vmem:[%s2909 + $0x38] sm:$0xff]
    %v2918 = vld [vmem:[%s2909 + $0x40] sm:$0xff]
    %v2919 = vld [vmem:[%s2909 + $0x48] sm:$0xff]
    %v2920 = vld [vmem:[%s2909 + $0x50] sm:$0xff]
    %v2921 = vld [vmem:[%s2909 + $0x58] sm:$0xff]
    %v2922 = vld [vmem:[%s2909 + $0x60] sm:$0xff]
    %v2923 = vld [vmem:[%s2909 + $0x68] sm:$0xff]
    %v2924 = vld [vmem:[%s2909 + $0x70] sm:$0xff]
    %v2925 = vld [vmem:[%s2909 + $0x78] sm:$0xff]
    %v2926 = vld [vmem:[%s2909 + $0x80] sm:$0xff]
    %v2927 = vld [vmem:[%s2909 + $0x88] sm:$0xff]
    %v2928 = vld [vmem:[%s2909 + $0x90] sm:$0xff]
    %v2929 = vld [vmem:[%s2909 + $0x98] sm:$0xff]
    %v2930 = vld [vmem:[%s2909 + $0xa0] sm:$0xff]
    %v2931 = vld [vmem:[%s2909 + $0xa8] sm:$0xff]
    %v2932 = vld [vmem:[%s2909 + $0xb0] sm:$0xff]
    %v2933 = vld [vmem:[%s2909 + $0xb8] sm:$0xff]
    %v2934 = vld [vmem:[%s2909 + $0xc0] sm:$0xff]
    %v2935 = vld [vmem:[%s2909 + $0xc8] sm:$0xff]
    %v2936 = vld [vmem:[%s2909 + $0xd0] sm:$0xff]
    %v2937 = vld [vmem:[%s2909 + $0xd8] sm:$0xff]
    %v2938 = vld [vmem:[%s2909 + $0xe0] sm:$0xff]
    %v2939 = vld [vmem:[%s2909 + $0xe8] sm:$0xff]
    %v2940 = vld [vmem:[%s2909 + $0xf0] sm:$0xff]
    %v2941 = vld [vmem:[%s2909 + $0xf8] sm:$0xff]
    %s2942 = scalar_lea.vmem [#allocation10], 16
    %v2943 = vld [vmem:[%s2942] sm:$0x3]
    %v2945 = vlaneseq
    %v2946 = vshrl.u32 %v2945, 7
    %v2947 = vsub.s32 0, %v2946
    %v2948 = vrot.slane %v2943, %v2947
    %v2949 = vlaneseq
    %v2950 = vshrl.u32 %v2949, 7
    %v2951 = vsub.s32 1, %v2950
    %v2952 = vrot.slane %v2943, %v2951
    %v2987 = vunpack.c.l.b16 %v2910
    %v2988 = vunpack.c.h.b16 %v2910
    %v2989 = vunpack.c.l.b16 %v2911
    %v2990 = vunpack.c.h.b16 %v2911
    %v2991 = vunpack.c.l.b16 %v2912
    %v2992 = vunpack.c.h.b16 %v2912
    %v2993 = vunpack.c.l.b16 %v2913
    %v2994 = vunpack.c.h.b16 %v2913
    %v2995 = vunpack.c.l.b16 %v2914
    %v2996 = vunpack.c.h.b16 %v2914
    %v2997 = vunpack.c.l.b16 %v2915
    %v2998 = vunpack.c.h.b16 %v2915
    %v2999 = vunpack.c.l.b16 %v2916
    %v3000 = vunpack.c.h.b16 %v2916
    %v3001 = vunpack.c.l.b16 %v2917
    %v3002 = vunpack.c.h.b16 %v2917
    %v3003 = vunpack.c.l.b16 %v2918
    %v3004 = vunpack.c.h.b16 %v2918
    %v3005 = vunpack.c.l.b16 %v2919
    %v3006 = vunpack.c.h.b16 %v2919
    %v3007 = vunpack.c.l.b16 %v2920
    %v3008 = vunpack.c.h.b16 %v2920
    %v3009 = vunpack.c.l.b16 %v2921
    %v3010 = vunpack.c.h.b16 %v2921
    %v3011 = vunpack.c.l.b16 %v2922
    %v3012 = vunpack.c.h.b16 %v2922
    %v3013 = vunpack.c.l.b16 %v2923
    %v3014 = vunpack.c.h.b16 %v2923
    %v3015 = vunpack.c.l.b16 %v2924
    %v3016 = vunpack.c.h.b16 %v2924
    %v3017 = vunpack.c.l.b16 %v2925
    %v3018 = vunpack.c.h.b16 %v2925
    %v3019 = vunpack.c.l.b16 %v2926
    %v3020 = vunpack.c.h.b16 %v2926
    %v3021 = vunpack.c.l.b16 %v2927
    %v3022 = vunpack.c.h.b16 %v2927
    %v3023 = vunpack.c.l.b16 %v2928
    %v3024 = vunpack.c.h.b16 %v2928
    %v3025 = vunpack.c.l.b16 %v2929
    %v3026 = vunpack.c.h.b16 %v2929
    %v3027 = vunpack.c.l.b16 %v2930
    %v3028 = vunpack.c.h.b16 %v2930
    %v3029 = vunpack.c.l.b16 %v2931
    %v3030 = vunpack.c.h.b16 %v2931
    %v3031 = vunpack.c.l.b16 %v2932
    %v3032 = vunpack.c.h.b16 %v2932
    %v3033 = vunpack.c.l.b16 %v2933
    %v3034 = vunpack.c.h.b16 %v2933
    %v3035 = vunpack.c.l.b16 %v2934
    %v3036 = vunpack.c.h.b16 %v2934
    %v3037 = vunpack.c.l.b16 %v2935
    %v3038 = vunpack.c.h.b16 %v2935
    %v3039 = vunpack.c.l.b16 %v2936
    %v3040 = vunpack.c.h.b16 %v2936
    %v3041 = vunpack.c.l.b16 %v2937
    %v3042 = vunpack.c.h.b16 %v2937
    %v3043 = vunpack.c.l.b16 %v2938
    %v3044 = vunpack.c.h.b16 %v2938
    %v3045 = vunpack.c.l.b16 %v2939
    %v3046 = vunpack.c.h.b16 %v2939
    %v3047 = vunpack.c.l.b16 %v2940
    %v3048 = vunpack.c.h.b16 %v2940
    %v3049 = vunpack.c.l.b16 %v2941
    %v3050 = vunpack.c.h.b16 %v2941
    %v3051 = vpack.c.b16 %v2989, %v2987
    %v3052 = vpack.c.b16 %v2990, %v2988
    %v3053 = vpack.c.b16 %v2993, %v2991
    %v3054 = vpack.c.b16 %v2994, %v2992
    %v3055 = vpack.c.b16 %v2997, %v2995
    %v3056 = vpack.c.b16 %v2998, %v2996
    %v3057 = vpack.c.b16 %v3001, %v2999
    %v3058 = vpack.c.b16 %v3002, %v3000
    %v3059 = vpack.c.b16 %v3005, %v3003
    %v3060 = vpack.c.b16 %v3006, %v3004
    %v3061 = vpack.c.b16 %v3009, %v3007
    %v3062 = vpack.c.b16 %v3010, %v3008
    %v3063 = vpack.c.b16 %v3013, %v3011
    %v3064 = vpack.c.b16 %v3014, %v3012
    %v3065 = vpack.c.b16 %v3017, %v3015
    %v3066 = vpack.c.b16 %v3018, %v3016
    %v3067 = vpack.c.b16 %v3021, %v3019
    %v3068 = vpack.c.b16 %v3022, %v3020
    %v3069 = vpack.c.b16 %v3025, %v3023
    %v3070 = vpack.c.b16 %v3026, %v3024
    %v3071 = vpack.c.b16 %v3029, %v3027
    %v3072 = vpack.c.b16 %v3030, %v3028
    %v3073 = vpack.c.b16 %v3033, %v3031
    %v3074 = vpack.c.b16 %v3034, %v3032
    %v3075 = vpack.c.b16 %v3037, %v3035
    %v3076 = vpack.c.b16 %v3038, %v3036
    %v3077 = vpack.c.b16 %v3041, %v3039
    %v3078 = vpack.c.b16 %v3042, %v3040
    %v3079 = vpack.c.b16 %v3045, %v3043
    %v3080 = vpack.c.b16 %v3046, %v3044
    %v3081 = vpack.c.b16 %v3049, %v3047
    %v3082 = vpack.c.b16 %v3050, %v3048
    %3115 = vmatprep.subr.bf16.mxu0 %v3052
    %3116 = vmatpush1.bf16.msra.mxu0 %v3051
    %3117 = vmatprep.subr.bf16.mxu0 %v3054
    %3118 = vmatpush1.bf16.msra.mxu0 %v3053
    %3119 = vmatprep.subr.bf16.mxu0 %v3056
    %3120 = vmatpush1.bf16.msra.mxu0 %v3055
    %3121 = vmatprep.subr.bf16.mxu0 %v3058
    %3122 = vmatpush1.bf16.msra.mxu0 %v3057
    %3123 = vmatprep.subr.bf16.mxu0 %v3060
    %3124 = vmatpush1.bf16.msra.mxu0 %v3059
    %3125 = vmatprep.subr.bf16.mxu0 %v3062
    %3126 = vmatpush1.bf16.msra.mxu0 %v3061
    %3127 = vmatprep.subr.bf16.mxu0 %v3064
    %3128 = vmatpush1.bf16.msra.mxu0 %v3063
    %3129 = vmatprep.subr.bf16.mxu0 %v3066
    %3130 = vmatpush1.bf16.msra.mxu0 %v3065
    %3131 = vmatprep.subr.bf16.mxu0 %v3068
    %3132 = vmatpush1.bf16.msra.mxu0 %v3067
    %3133 = vmatprep.subr.bf16.mxu0 %v3070
    %3134 = vmatpush1.bf16.msra.mxu0 %v3069
    %3135 = vmatprep.subr.bf16.mxu0 %v3072
    %3136 = vmatpush1.bf16.msra.mxu0 %v3071
    %3137 = vmatprep.subr.bf16.mxu0 %v3074
    %3138 = vmatpush1.bf16.msra.mxu0 %v3073
    %3139 = vmatprep.subr.bf16.mxu0 %v3076
    %3140 = vmatpush1.bf16.msra.mxu0 %v3075
    %3141 = vmatprep.subr.bf16.mxu0 %v3078
    %3142 = vmatpush1.bf16.msra.mxu0 %v3077
    %3143 = vmatprep.subr.bf16.mxu0 %v3080
    %3144 = vmatpush1.bf16.msra.mxu0 %v3079
    %3145 = vmatprep.subr.bf16.mxu0 %v3082
    %3146 = vmatpush1.bf16.msra.mxu0 %v3081
    %3147 = vmatprep.mubr.bf16.mxu0 %v2908
    %3148 = vmatmul.mubr.bf16.gmra.mrb[0].mxu0 %v2907
    %v3149 = vpop.f32.mrb[0].mxu0
    %v3150 = vadd.f32 %v2948, %v3149
    %v3151 = vpop.f32.mrb[0].mxu0
    %v3152 = vadd.f32 %v2952, %v3151
    %v3153 = vpop.f32.mrb[0].mxu0
    %v3154 = vpop.f32.mrb[0].mxu0
    %3155 = vdwg.mxu0
    %v3156 = vmax.f32 %v3150, 0.0
    %v3157 = vmax.f32 %v3152, 0.0
    %v3158 = vpack.c.bf16 %v3156, %v3156
    %v3159 = vpack.c.bf16 %v3157, %v3157
    %v3160 = vld [vmem:[#allocation11] sm:$0xf]
    %v3161 = vld [vmem:[#allocation11 + $0x4] sm:$0xf]
    %v3162 = vld [vmem:[#allocation11 + $0x8] sm:$0xf]
    %v3163 = vld [vmem:[#allocation11 + $0xc] sm:$0xf]
    %v3164 = vld [vmem:[#allocation11 + $0x10] sm:$0xf]
    %v3165 = vld [vmem:[#allocation11 + $0x14] sm:$0xf]
    %v3166 = vld [vmem:[#allocation11 + $0x18] sm:$0xf]
    %v3167 = vld [vmem:[#allocation11 + $0x1c] sm:$0xf]
    %v3168 = vld [vmem:[#allocation11 + $0x20] sm:$0xf]
    %v3169 = vld [vmem:[#allocation11 + $0x24] sm:$0xf]
    %v3170 = vld [vmem:[#allocation11 + $0x28] sm:$0xf]
    %v3171 = vld [vmem:[#allocation11 + $0x2c] sm:$0xf]
    %v3172 = vld [vmem:[#allocation11 + $0x30] sm:$0xf]
    %v3173 = vld [vmem:[#allocation11 + $0x34] sm:$0xf]
    %v3174 = vld [vmem:[#allocation11 + $0x38] sm:$0xf]
    %v3175 = vld [vmem:[#allocation11 + $0x3c] sm:$0xf]
    %v3176 = vld [vmem:[#allocation11 + $0x40] sm:$0xf]
    %v3177 = vld [vmem:[#allocation11 + $0x44] sm:$0xf]
    %v3178 = vld [vmem:[#allocation11 + $0x48] sm:$0xf]
    %v3179 = vld [vmem:[#allocation11 + $0x4c] sm:$0xf]
    %v3180 = vld [vmem:[#allocation11 + $0x50] sm:$0xf]
    %v3181 = vld [vmem:[#allocation11 + $0x54] sm:$0xf]
    %v3182 = vld [vmem:[#allocation11 + $0x58] sm:$0xf]
    %v3183 = vld [vmem:[#allocation11 + $0x5c] sm:$0xf]
    %v3184 = vld [vmem:[#allocation11 + $0x60] sm:$0xf]
    %v3185 = vld [vmem:[#allocation11 + $0x64] sm:$0xf]
    %v3186 = vld [vmem:[#allocation11 + $0x68] sm:$0xf]
    %v3187 = vld [vmem:[#allocation11 + $0x6c] sm:$0xf]
    %v3188 = vld [vmem:[#allocation11 + $0x70] sm:$0xf]
    %v3189 = vld [vmem:[#allocation11 + $0x74] sm:$0xf]
    %v3190 = vld [vmem:[#allocation11 + $0x78] sm:$0xf]
    %v3191 = vld [vmem:[#allocation11 + $0x7c] sm:$0xf]
    %v3192 = vld [vmem:[#allocation13] sm:$0x1]
    %v3194 = vlaneseq
    %v3195 = vshrl.u32 %v3194, 7
    %v3196 = vsub.s32 0, %v3195
    %v3197 = vrot.slane %v3192, %v3196
    %v3231 = vunpack.c.l.b16 %v3160
    %v3232 = vunpack.c.l.b16 %v3161
    %v3233 = vunpack.c.l.b16 %v3162
    %v3234 = vunpack.c.l.b16 %v3163
    %v3235 = vunpack.c.l.b16 %v3164
    %v3236 = vunpack.c.l.b16 %v3165
    %v3237 = vunpack.c.l.b16 %v3166
    %v3238 = vunpack.c.l.b16 %v3167
    %v3239 = vunpack.c.l.b16 %v3168
    %v3240 = vunpack.c.l.b16 %v3169
    %v3241 = vunpack.c.l.b16 %v3170
    %v3242 = vunpack.c.l.b16 %v3171
    %v3243 = vunpack.c.l.b16 %v3172
    %v3244 = vunpack.c.l.b16 %v3173
    %v3245 = vunpack.c.l.b16 %v3174
    %v3246 = vunpack.c.l.b16 %v3175
    %v3247 = vunpack.c.l.b16 %v3176
    %v3248 = vunpack.c.l.b16 %v3177
    %v3249 = vunpack.c.l.b16 %v3178
    %v3250 = vunpack.c.l.b16 %v3179
    %v3251 = vunpack.c.l.b16 %v3180
    %v3252 = vunpack.c.l.b16 %v3181
    %v3253 = vunpack.c.l.b16 %v3182
    %v3254 = vunpack.c.l.b16 %v3183
    %v3255 = vunpack.c.l.b16 %v3184
    %v3256 = vunpack.c.l.b16 %v3185
    %v3257 = vunpack.c.l.b16 %v3186
    %v3258 = vunpack.c.l.b16 %v3187
    %v3259 = vunpack.c.l.b16 %v3188
    %v3260 = vunpack.c.l.b16 %v3189
    %v3261 = vunpack.c.l.b16 %v3190
    %v3262 = vunpack.c.l.b16 %v3191
    %v3263 = vpack.c.b16 %v3232, %v3231
    %v3264 = vpack.c.b16 %v3234, %v3233
    %v3265 = vpack.c.b16 %v3236, %v3235
    %v3266 = vpack.c.b16 %v3238, %v3237
    %v3267 = vpack.c.b16 %v3240, %v3239
    %v3268 = vpack.c.b16 %v3242, %v3241
    %v3269 = vpack.c.b16 %v3244, %v3243
    %v3270 = vpack.c.b16 %v3246, %v3245
    %v3271 = vpack.c.b16 %v3248, %v3247
    %v3272 = vpack.c.b16 %v3250, %v3249
    %v3273 = vpack.c.b16 %v3252, %v3251
    %v3274 = vpack.c.b16 %v3254, %v3253
    %v3275 = vpack.c.b16 %v3256, %v3255
    %v3276 = vpack.c.b16 %v3258, %v3257
    %v3277 = vpack.c.b16 %v3260, %v3259
    %v3278 = vpack.c.b16 %v3262, %v3261
    %3295 = vmatprep.subr.bf16.mxu0 0
    %3296 = vmatpush1.bf16.msra.mxu0 %v3263
    %3297 = vmatprep.subr.bf16.mxu0 0
    %3298 = vmatpush1.bf16.msra.mxu0 %v3264
    %3299 = vmatprep.subr.bf16.mxu0 0
    %3300 = vmatpush1.bf16.msra.mxu0 %v3265
    %3301 = vmatprep.subr.bf16.mxu0 0
    %3302 = vmatpush1.bf16.msra.mxu0 %v3266
    %3303 = vmatprep.subr.bf16.mxu0 0
    %3304 = vmatpush1.bf16.msra.mxu0 %v3267
    %3305 = vmatprep.subr.bf16.mxu0 0
    %3306 = vmatpush1.bf16.msra.mxu0 %v3268
    %3307 = vmatprep.subr.bf16.mxu0 0
    %3308 = vmatpush1.bf16.msra.mxu0 %v3269
    %3309 = vmatprep.subr.bf16.mxu0 0
    %3310 = vmatpush1.bf16.msra.mxu0 %v3270
    %3311 = vmatprep.subr.bf16.mxu0 0
    %3312 = vmatpush1.bf16.msra.mxu0 %v3271
    %3313 = vmatprep.subr.bf16.mxu0 0
    %3314 = vmatpush1.bf16.msra.mxu0 %v3272
    %3315 = vmatprep.subr.bf16.mxu0 0
    %3316 = vmatpush1.bf16.msra.mxu0 %v3273
    %3317 = vmatprep.subr.bf16.mxu0 0
    %3318 = vmatpush1.bf16.msra.mxu0 %v3274
    %3319 = vmatprep.subr.bf16.mxu0 0
    %3320 = vmatpush1.bf16.msra.mxu0 %v3275
    %3321 = vmatprep.subr.bf16.mxu0 0
    %3322 = vmatpush1.bf16.msra.mxu0 %v3276
    %3323 = vmatprep.subr.bf16.mxu0 0
    %3324 = vmatpush1.bf16.msra.mxu0 %v3277
    %3325 = vmatprep.subr.bf16.mxu0 0
    %3326 = vmatpush1.bf16.msra.mxu0 %v3278
    %3327 = vmatprep.mubr.bf16.mxu0 %v3159
    %3328 = vmatmul.mubr.bf16.gmra.mrb[0].mxu0 %v3158
    %v3329 = vpop.f32.mrb[0].mxu0
    %v3330 = vadd.f32 %v3197, %v3329
    %v3331 = vpop.f32.mrb[0].mxu0
    %v3332 = vpop.f32.mrb[0].mxu0
    %v3333 = vpop.f32.mrb[0].mxu0
    %3334 = vdwg.mxu0
    %3335 = vst [vmem:[#allocation14] sm:$0xff] %v3330
    // Predicated region
    $region58: #{relu_solution_forward.1} parent=1 // pred_check
      _
    $region59: #{relu_solution_forward.1} parent=1 // pred_check_branch
      %3337 = sbr.rel (0) target = $region61
    $region60: #{relu_solution_forward.1} parent=1 // pred_region
      %s3339 = ssub.s32 128, 128
      %3340 = vsyncadd [#allocation4], %s3339
      %s3342 = sshll.u32 [#allocation14], 4
      %s3343 = int_to_ptr.vmem [resolvable:$true] %s3342
      %3345 = dma.vmem_to_hbm [thread:$0]  %s3343, 128, %s7, [#allocation4]
    $region61: #{relu_solution_forward.1} parent=1 // pred_fallthru
      _
    // Predicated region
    $region62: #{relu_solution_forward.1} parent=1 // pred_check
      _
    $region63: #{relu_solution_forward.1} parent=1 // pred_check_branch
      %3347 = sbr.rel (0) target = $region65
    $region64: #{relu_solution_forward.1} parent=1 // pred_region
      %3348 = dma.done [#allocation4], 128
    $region65: #{relu_solution_forward.1} parent=1 // pred_fallthru
      _
    %3349 = vsyncpa [#allocation3], 1
    %3350 = vsyncpa [#allocation6], 1
    %3351 = vsyncpa [#allocation9], 1
    %3352 = vsyncpa [#allocation12], 1
    %3353 = vsyncpa [#allocation4], 1

</llo_original>
